<compile_context>
chip_gen: v7x
topology: tpu7x:2x2x1
jax: 0.10.0
libtpu: 0.0.40
codegen_flags: <defaults>
</compile_context>

<pallas_src>
from functools import partial

import jax
import jax.numpy as jnp
from jax.experimental import pallas as pl
from jax.experimental.pallas import tpu as pltpu

EPS = 1e-5  # nn.InstanceNorm1d default eps

# ---- packed bf16 weight slab layout (rows; every segment start is 16-row aligned) ----
R_W1C = 0      # (16,128)  conv1, continuous raw columns (xyz + fused pae/plddt), block-diag
R_W1OH = 16    # (128,128) conv1, aa/chain/atom one-hot columns, block-diag
R_W2 = 144     # (128,128) conv2 block-diag
R_W3 = 272     # (128,128) conv3 block-diag
R_FW1 = 400    # (128,128) fc1 block-diag
R_FW2 = 528    # (128,128) fc2 block-diag
R_FW3 = 656    # (128,128) fc3 (logit in column 0)
W_ROWS = 784

# ---- packed f32 per-channel vector slab rows (each 64-wide vector tiled to both halves) ----
V_B1, V_G1, V_BE1 = 0, 1, 2
V_B2, V_G2, V_BE2 = 3, 4, 5
V_B3, V_G3, V_BE3 = 6, 7, 8
V_FB1, V_FB2, V_FB3 = 9, 10, 11
V_ROWS = 16

# one-hot column offsets inside each 64-wide per-point feature block
OH_AA, OH_CH, OH_AT = 8, 32, 40   # room for <=24 aa classes, <=8 chain ids, <=8 atom types


def pointnet_kernel(x_ref, w_ref, v_ref, out_ref, *, n_valid):
    tb, n2, _ = x_ref.shape          # x_ref: (tb, n2, 16) -> two consecutive points per row
    m2 = tb * n2
    inv_n = 1.0 / n_valid

    def vec(i):                      # (1,128) per-channel vector (value tiled to both halves)
        return v_ref[i:i + 1, :]

    def mm(a2, r0, rows):            # (m,K) @ (K,128) on the MXU, bf16 operands, f32 acc
        return jnp.dot(a2.astype(jnp.bfloat16), w_ref[r0:r0 + rows, :],
                       preferred_element_type=jnp.float32)

    # Validity mask over point slots; only materialized when the point dim was padded.
    if n_valid != 2 * n2:
        row = jax.lax.broadcasted_iota(jnp.int32, (1, n2, 128), 1)
        lane3 = jax.lax.broadcasted_iota(jnp.int32, (1, n2, 128), 2)
        valid = (2 * row + lane3 // 64) < n_valid          # (1, n2, 128) bool
    else:
        valid = None

    def inorm(h2, gi, bi, relu):
        # InstanceNorm1d(affine=True): per-(batch, channel) stats over the n points,
        # affine folded into scale/shift; one-pass sum / sum-of-squares in f32.
        h = h2.reshape(tb, n2, 128)
        hm = h if valid is None else jnp.where(valid, h, 0.0)
        s1 = jnp.sum(hm, axis=1)                            # (tb,128)
        s2 = jnp.sum(hm * h, axis=1)                        # masked sum of squares
        s1 = s1 + pltpu.roll(s1, 64, 1)                     # combine the two point-halves
        s2 = s2 + pltpu.roll(s2, 64, 1)
        mean = s1 * inv_n
        var = jnp.maximum(s2 * inv_n - mean * mean, 0.0)    # clamp f32 cancellation
        scale = jax.lax.rsqrt(var + EPS) * vec(gi)          # (tb,128)
        shift = vec(bi) - mean * scale
        y = h * scale[:, None, :] + shift[:, None, :]
        y = jnp.maximum(y, 0.0) if relu else y
        return y.reshape(m2, 128)

    # ---- conv1, fused with feature assembly ----
    # Continuous part: raw columns (xyz, pae, plddt) hit pre-fused weight rows directly.
    # One-hot part: aa/chain/atom one-hots for BOTH packed points built from one iota.
    x2 = x_ref[...].reshape(m2, 16)
    xi = x2.astype(jnp.int32)                               # only the index columns are used
    lane = jax.lax.broadcasted_iota(jnp.int32, (m2, 128), 1)
    # NOTE: out-of-range chain/aa/atom indices produce an all-zero one-hot row here
    # (PyTorch would raise); inputs are assumed to be in range.
    oh_cond = ((lane == OH_AA + xi[:, 4:5]) | (lane == OH_CH + xi[:, 3:4]) |
               (lane == OH_AT + xi[:, 5:6]) |
               (lane == 64 + OH_AA + xi[:, 12:13]) | (lane == 64 + OH_CH + xi[:, 11:12]) |
               (lane == 64 + OH_AT + xi[:, 13:14]))
    oh = jnp.where(oh_cond, 1.0, 0.0)

    h = mm(x2, R_W1C, 16) + mm(oh, R_W1OH, 128) + vec(V_B1)
    h = inorm(h, V_G1, V_BE1, relu=True)

    # ---- conv2 / conv3 (block-diagonal 128-wide channel slabs) ----
    h = inorm(mm(h, R_W2, 128) + vec(V_B2), V_G2, V_BE2, relu=True)
    h = inorm(mm(h, R_W3, 128) + vec(V_B3), V_G3, V_BE3, relu=False)

    # ---- global max-pool over points (combine lane-halves with a roll) ----
    h3 = h.reshape(tb, n2, 128)
    hmax = h3 if valid is None else jnp.where(valid, h3, -jnp.inf)
    p = jnp.max(hmax, axis=1)                               # (tb,128)
    pooled = jnp.maximum(p, pltpu.roll(p, 64, 1))           # per-channel max in both halves

    # ---- FC head ----
    z = jnp.maximum(mm(pooled, R_FW1, 128) + vec(V_FB1), 0.0)
    z = jnp.maximum(mm(z, R_FW2, 128) + vec(V_FB2), 0.0)
    # TODO(synk): nn.Dropout(0.3) is identity here (inference / eval mode).
    z = mm(z, R_FW3, 128) + vec(V_FB3)                      # (tb,128), logit in lane 0
    out_ref[...] = jax.nn.sigmoid(z).reshape(1, tb, 128)    # lane-dense store


# --------------------------------------------------------------------------------------
# Parameters (PyTorch-shaped) and packing into the fused slabs.
# --------------------------------------------------------------------------------------
def init_params(key, num_aa_types=20, num_atom_types=4, num_chain_ids=2):
    ks = jax.random.split(key, 24)

    def rnd(k, shape, scale=0.1):
        return (scale * jax.random.normal(k, shape)).astype(jnp.float32)

    p = {}
    p['aa_emb'] = rnd(ks[0], (num_aa_types + 1, 3), 1.0)   # nn.Embedding(21, 3)
    p['pae_w'] = rnd(ks[1], (3, 1))                        # nn.Linear(1, 3)
    p['pae_b'] = rnd(ks[2], (3,))
    p['plddt_w'] = rnd(ks[3], (1, 1))                      # nn.Linear(1, 1)
    p['plddt_b'] = rnd(ks[4], (1,))
    in_ch = 3 + 3 + (num_chain_ids + 1) + (num_atom_types + 1) + 3 + 1  # 18
    # 1x1 convs, stored pre-transposed as (Cin, Cout); biases/affine as (1, C)
    p['w1'], p['b1'] = rnd(ks[5], (in_ch, 16)), rnd(ks[6], (1, 16))
    p['w2'], p['b2'] = rnd(ks[7], (16, 32)), rnd(ks[8], (1, 32))
    p['w3'], p['b3'] = rnd(ks[9], (32, 64)), rnd(ks[10], (1, 64))
    # InstanceNorm1d(affine=True) params
    p['g1'], p['be1'] = 1.0 + rnd(ks[11], (1, 16)), rnd(ks[12], (1, 16))
    p['g2'], p['be2'] = 1.0 + rnd(ks[13], (1, 32)), rnd(ks[14], (1, 32))
    p['g3'], p['be3'] = 1.0 + rnd(ks[15], (1, 64)), rnd(ks[16], (1, 64))
    # FC head, stored pre-transposed as (in, out)
    p['fw1'], p['fb1'] = rnd(ks[17], (64, 64)), rnd(ks[18], (1, 64))
    p['fw2'], p['fb2'] = rnd(ks[19], (64, 32)), rnd(ks[20], (1, 32))
    p['fw3'], p['fb3'] = rnd(ks[21], (32, 1)), rnd(ks[22], (1, 1))
    return p


def pack_params(p):
    """Fuse the feature embeddings into conv1 and pack everything into two slabs."""
    w1 = p['w1']   # (18,16); feats: xyz 0:3, aa 3:6, chain 6:9, atom 9:14, pae 14:17, plddt 17:18
    w1_xyz, w1_aa, w1_ch, w1_at, w1_pae, w1_pl = (
        w1[0:3], w1[3:6], w1[6:9], w1[9:14], w1[14:17], w1[17:18])
    waa = p['aa_emb'] @ w1_aa                                 # (21,16) embedding folded into conv1
    v_pae = p['pae_w'][:, 0] @ w1_pae                         # (16,)  pae raw-scalar coefficient
    v_pl = p['plddt_w'][0, 0] * w1_pl[0]                      # (16,)  plddt raw-scalar coefficient
    b1_eff = p['b1'][0] + p['pae_b'] @ w1_pae + p['plddt_b'][0] * w1_pl[0]

    # conv1 continuous block: raw input columns [x,y,z,chain,aa,atom,pae,plddt] -> 16 channels
    w1c = jnp.zeros((8, 16), jnp.float32)
    w1c = w1c.at[0:3].set(w1_xyz).at[6].set(v_pae).at[7].set(v_pl)
    # conv1 one-hot block: aa/chain/atom one-hots at 8-aligned column offsets
    w1oh = jnp.zeros((64, 16), jnp.float32)
    w1oh = w1oh.at[OH_AA:OH_AA + 21].set(waa)
    w1oh = w1oh.at[OH_CH:OH_CH + 3].set(w1_ch)
    w1oh = w1oh.at[OH_AT:OH_AT + 5].set(w1_at)

    def bd(half, w):
        """Block-diagonal (2*half, 128): w at (0,0) and (half, 64) for the two packed points."""
        r, c = w.shape
        blk = jnp.zeros((2 * half, 128), jnp.float32)
        blk = blk.at[0:r, 0:c].set(w)
        blk = blk.at[half:half + r, 64:64 + c].set(w)
        return blk

    wslab = jnp.concatenate([
        bd(8, w1c),            # R_W1C
        bd(64, w1oh),          # R_W1OH
        bd(64, p['w2']),       # R_W2
        bd(64, p['w3']),       # R_W3
        bd(64, p['fw1']),      # R_FW1
        bd(64, p['fw2']),      # R_FW2
        bd(64, p['fw3']),      # R_FW3
    ], axis=0).astype(jnp.bfloat16)
    assert wslab.shape == (W_ROWS, 128)

    def tile2(v):                                            # tile a (<=64,) vector to both halves
        v = jnp.asarray(v, jnp.float32).reshape(-1)
        row = jnp.zeros((128,), jnp.float32)
        return row.at[:v.shape[0]].set(v).at[64:64 + v.shape[0]].set(v)

    rows = [tile2(b1_eff), tile2(p['g1'][0]), tile2(p['be1'][0]),
            tile2(p['b2'][0]), tile2(p['g2'][0]), tile2(p['be2'][0]),
            tile2(p['b3'][0]), tile2(p['g3'][0]), tile2(p['be3'][0]),
            tile2(p['fb1'][0]), tile2(p['fb2'][0]), tile2(p['fb3'][0])]
    vslab = jnp.zeros((V_ROWS, 128), jnp.float32).at[:len(rows)].set(jnp.stack(rows))
    return wslab, vslab


def pointnet_forward(x, params, *, target_rows=8192):
    """x: (B, N, 8) f32; columns: xyz(0:3), chain(3), aa(4), atom(5), pae(6), plddt(7)."""
    B, N, C = x.shape
    assert C == 8
    wslab, vslab = pack_params(params)

    # Pad the point dim to a multiple of 16 so two-point packing is exact and every
    # (tb, n2, 128) <-> (tb*n2, 128) reshape is (8,128)-tile aligned (free).  Padded
    # point slots are masked out of the IN stats / max-pool inside the kernel.
    n_pad = max(16, pl.cdiv(N, 16) * 16)
    xp = x.astype(jnp.float32)
    if n_pad != N:
        xp = jnp.pad(xp, ((0, 0), (0, n_pad - N), (0, 0)))
    n2 = n_pad // 2
    xp = xp.reshape(B, n2, 16)                               # two consecutive points per row

    # Batch tile: keep tb*n_pad (matmul M dim) near target_rows to amortize the per-step
    # pipeline overhead while the live f32 (m2,128) intermediates stay a few MiB
    # (fits v7x's 64 MiB VMEM and the default scoped limits everywhere).  On v5e/v6e
    # (128 MiB VMEM) target_rows / vmem_limit_bytes can be pushed higher by the caller.
    tb = max(1, min(B, target_rows // n_pad))
    if B >= 2:
        tb = min(tb, pl.cdiv(B, 2))                          # >=2 grid steps -> both v7x TCs get work
    bp = pl.cdiv(B, tb) * tb
    if bp != B:
        # Pad only whole batch rows (never real points), so IN / max-pool stats are
        # untouched; padded rows are discarded below.
        xp = jnp.pad(xp, ((0, bp - B), (0, 0), (0, 0)))
    steps = bp // tb
    # TODO(synk): very large N would need an N-tiled variant with streaming sum/sumsq/max
    # accumulators to stay inside v7x's 64 MiB VMEM; not needed at these sizes.

    out = pl.pallas_call(
        partial(pointnet_kernel, n_valid=N),
        out_shape=jax.ShapeDtypeStruct((steps, tb, 128), jnp.float32),
        grid=(steps,),
        in_specs=[
            pl.BlockSpec((tb, n2, 16), lambda b: (b, 0, 0)),   # batch-tiled raw point pairs
            pl.BlockSpec((W_ROWS, 128), lambda b: (0, 0)),     # resident bf16 weight slab
            pl.BlockSpec((V_ROWS, 128), lambda b: (0, 0)),     # resident f32 vector slab
        ],
        out_specs=pl.BlockSpec((1, tb, 128), lambda b: (b, 0, 0)),
        compiler_params=pltpu.CompilerParams(
            dimension_semantics=("parallel",),                 # shard batch steps across TCs
            vmem_limit_bytes=32 * 1024 * 1024,
        ),
    )(xp, wslab, vslab)
    return out.reshape(bp, 128)[:B, 0]                         # == x.squeeze(1) -> (B,)


# --------------------------------------------------------------------------------------
# Pure-JAX f32 reference (mirrors the PyTorch module) for a correctness check.
# --------------------------------------------------------------------------------------
def pointnet_reference(x, p, num_chain_ids=2, num_atom_types=4):
    xyz = x[:, :, :3]
    chain = jax.nn.one_hot(x[:, :, 3].astype(jnp.int32), num_chain_ids + 1, dtype=jnp.float32)
    atom = jax.nn.one_hot(x[:, :, 5].astype(jnp.int32), num_atom_types + 1, dtype=jnp.float32)
    aa = p['aa_emb'][x[:, :, 4].astype(jnp.int32)]
    pae = x[:, :, 6:7] @ p['pae_w'].T + p['pae_b']
    plddt = x[:, :, 7:8] @ p['plddt_w'].T + p['plddt_b']
    f = jnp.concatenate([xyz, aa, chain, atom, pae, plddt], axis=-1)

    def block(h, w, b, g, be, relu=True):
        y = jnp.einsum('bnc,cd->bnd', h, w) + b
        mu = jnp.mean(y, axis=1, keepdims=True)
        var = jnp.mean((y - mu) ** 2, axis=1, keepdims=True)
        y = (y - mu) * jax.lax.rsqrt(var + EPS) * g + be
        return jnp.maximum(y, 0.0) if relu else y

    h = block(f, p['w1'], p['b1'], p['g1'], p['be1'])
    h = block(h, p['w2'], p['b2'], p['g2'], p['be2'])
    h = block(h, p['w3'], p['b3'], p['g3'], p['be3'], relu=False)
    pooled = jnp.max(h, axis=1)
    z = jnp.maximum(pooled @ p['fw1'] + p['fb1'], 0.0)
    z = jnp.maximum(z @ p['fw2'] + p['fb2'], 0.0)
    z = z @ p['fw3'] + p['fb3']
    return jax.nn.sigmoid(z)[:, 0]


if __name__ == "__main__":
    key = jax.random.PRNGKey(0)
    kp, kd = jax.random.split(key)
    params = init_params(kp)

    def make_points(k, B, N):
        k1, k2, k3, k4, k5, k6 = jax.random.split(k, 6)
        xyz = jax.random.normal(k1, (B, N, 3), dtype=jnp.float32)
        chain = jax.random.randint(k2, (B, N, 1), 0, 3).astype(jnp.float32)
        aa = jax.random.randint(k3, (B, N, 1), 0, 21).astype(jnp.float32)
        atom = jax.random.randint(k4, (B, N, 1), 0, 5).astype(jnp.float32)
        pae = jax.random.uniform(k5, (B, N, 1), dtype=jnp.float32) * 30.0
        plddt = jax.random.uniform(k6, (B, N, 1), dtype=jnp.float32) * 100.0
        return jnp.concatenate([xyz, chain, aa, atom, pae, plddt], axis=-1)   # (B, N, 8)

    ka, kb = jax.random.split(kd)
    # (1) clean path: B=2, N=16 -> no point padding/masking, two grid steps of tb=1
    x_a = make_points(ka, 2, 16)
    out_a = pointnet_forward(x_a, params)
    ref_a = pointnet_reference(x_a, params)
    # (2) padded path: B=5, N=24 -> point dim padded to 32 (masked stats/pool),
    #     batch padded to 6, two grid steps of tb=3
    x_b = make_points(kb, 5, 24)
    out_b = pointnet_forward(x_b, params)
    ref_b = pointnet_reference(x_b, params)
    jax.block_until_ready((out_a, out_b))

    assert out_a.shape == (2,) and out_b.shape == (5,)
    assert bool(jnp.all(jnp.isfinite(out_a))) and bool(jnp.all(jnp.isfinite(out_b)))
    # bf16 matmul operands (incl. pae/plddt folded into conv1) vs the f32 reference;
    # observed error is ~1e-2 on the sigmoid output.
    assert float(jnp.max(jnp.abs(out_a - ref_a))) < 0.1
    assert float(jnp.max(jnp.abs(out_b - ref_b))) < 0.1
    print("KERNEL_OK")
</pallas_src>

<mosaic_0001>
module attributes {stable_mosaic.version = 11 : i64} {
  func.func @pointnet_kernel(%arg0: i32, %arg1: memref<1x8x16xf32, #tpu.memory_space<vmem>>, %arg2: memref<784x128xbf16, #tpu.memory_space<vmem>>, %arg3: memref<16x128xf32, #tpu.memory_space<vmem>>, %arg4: memref<1x1x128xf32, #tpu.memory_space<vmem>>) attributes {dimension_semantics = [#tpu.dimension_semantics<parallel>], iteration_bounds = array<i64: 2>, scalar_prefetch = 0 : i64, scratch_operands = 0 : i64, tpu.core_type = #tpu.core_type<tc>, window_params = [{transform_indices = @transform_0, window_bounds = array<i64: 1, 8, 16>}, {pipeline_mode = #tpu.pipeline_mode<synchronous>, transform_indices = @transform_1, window_bounds = array<i64: 784, 128>}, {pipeline_mode = #tpu.pipeline_mode<synchronous>, transform_indices = @transform_2, window_bounds = array<i64: 16, 128>}, {transform_indices = @transform_3, window_bounds = array<i64: 1, 1, 128>}]} {
    %c0 = arith.constant 0 : index
    %c0_0 = arith.constant 0 : index
    %c0_1 = arith.constant 0 : index
    %0 = vector.load %arg1[%c0, %c0_0, %c0_1] : memref<1x8x16xf32, #tpu.memory_space<vmem>>, vector<1x8x16xf32>
    %1 = vector.shape_cast %0 : vector<1x8x16xf32> to vector<8x16xf32>
    %2 = arith.fptosi %1 : vector<8x16xf32> to vector<8x16xi32>
    %3 = tpu.iota {dimensions = array<i32: 1>} : vector<8x128xi32>
    %4 = vector.extract_strided_slice %2 {offsets = [0, 4], sizes = [8, 1], strides = [1, 1]} : vector<8x16xi32> to vector<8x1xi32>
    %c8_i32 = arith.constant 8 : i32
    %5 = vector.broadcast %c8_i32 : i32 to vector<8x1xi32>
    %6 = arith.addi %5, %4 : vector<8x1xi32>
    %7 = vector.broadcast %6 : vector<8x1xi32> to vector<8x128xi32>
    %8 = arith.cmpi eq, %3, %7 : vector<8x128xi32>
    %9 = vector.extract_strided_slice %2 {offsets = [0, 3], sizes = [8, 1], strides = [1, 1]} : vector<8x16xi32> to vector<8x1xi32>
    %c32_i32 = arith.constant 32 : i32
    %10 = vector.broadcast %c32_i32 : i32 to vector<8x1xi32>
    %11 = arith.addi %10, %9 : vector<8x1xi32>
    %12 = vector.broadcast %11 : vector<8x1xi32> to vector<8x128xi32>
    %13 = arith.cmpi eq, %3, %12 : vector<8x128xi32>
    %14 = arith.ori %8, %13 : vector<8x128xi1>
    %15 = vector.extract_strided_slice %2 {offsets = [0, 5], sizes = [8, 1], strides = [1, 1]} : vector<8x16xi32> to vector<8x1xi32>
    %c40_i32 = arith.constant 40 : i32
    %16 = vector.broadcast %c40_i32 : i32 to vector<8x1xi32>
    %17 = arith.addi %16, %15 : vector<8x1xi32>
    %18 = vector.broadcast %17 : vector<8x1xi32> to vector<8x128xi32>
    %19 = arith.cmpi eq, %3, %18 : vector<8x128xi32>
    %20 = arith.ori %14, %19 : vector<8x128xi1>
    %21 = vector.extract_strided_slice %2 {offsets = [0, 12], sizes = [8, 1], strides = [1, 1]} : vector<8x16xi32> to vector<8x1xi32>
    %c72_i32 = arith.constant 72 : i32
    %22 = vector.broadcast %c72_i32 : i32 to vector<8x1xi32>
    %23 = arith.addi %22, %21 : vector<8x1xi32>
    %24 = vector.broadcast %23 : vector<8x1xi32> to vector<8x128xi32>
    %25 = arith.cmpi eq, %3, %24 : vector<8x128xi32>
    %26 = arith.ori %20, %25 : vector<8x128xi1>
    %27 = vector.extract_strided_slice %2 {offsets = [0, 11], sizes = [8, 1], strides = [1, 1]} : vector<8x16xi32> to vector<8x1xi32>
    %c96_i32 = arith.constant 96 : i32
    %28 = vector.broadcast %c96_i32 : i32 to vector<8x1xi32>
    %29 = arith.addi %28, %27 : vector<8x1xi32>
    %30 = vector.broadcast %29 : vector<8x1xi32> to vector<8x128xi32>
    %31 = arith.cmpi eq, %3, %30 : vector<8x128xi32>
    %32 = arith.ori %26, %31 : vector<8x128xi1>
    %33 = vector.extract_strided_slice %2 {offsets = [0, 13], sizes = [8, 1], strides = [1, 1]} : vector<8x16xi32> to vector<8x1xi32>
    %c104_i32 = arith.constant 104 : i32
    %34 = vector.broadcast %c104_i32 : i32 to vector<8x1xi32>
    %35 = arith.addi %34, %33 : vector<8x1xi32>
    %36 = vector.broadcast %35 : vector<8x1xi32> to vector<8x128xi32>
    %37 = arith.cmpi eq, %3, %36 : vector<8x128xi32>
    %38 = arith.ori %32, %37 : vector<8x128xi1>
    %cst = arith.constant 1.000000e+00 : f32
    %cst_2 = arith.constant 0.000000e+00 : f32
    %39 = vector.broadcast %cst : f32 to vector<8x128xf32>
    %40 = vector.broadcast %cst_2 : f32 to vector<8x128xf32>
    %41 = arith.select %38, %39, %40 : vector<8x128xi1>, vector<8x128xf32>
    %42 = arith.truncf %1 : vector<8x16xf32> to vector<8x16xbf16>
    %c0_3 = arith.constant 0 : index
    %c0_4 = arith.constant 0 : index
    %43 = vector.load %arg2[%c0_3, %c0_4] : memref<784x128xbf16, #tpu.memory_space<vmem>>, vector<16x128xbf16>
    %cst_5 = arith.constant dense<0.000000e+00> : vector<8x128xf32>
    %44 = tpu.matmul %42, %43, %cst_5 {dimension_numbers = #tpu.dot_dimension_numbers<[1], [0], [0], [1], [0, 0, 1, 1], [], []>} : vector<8x16xbf16>, vector<16x128xbf16>, vector<8x128xf32> -> vector<8x128xf32>
    %45 = arith.truncf %41 : vector<8x128xf32> to vector<8x128xbf16>
    %c16 = arith.constant 16 : index
    %c0_6 = arith.constant 0 : index
    %46 = vector.load %arg2[%c16, %c0_6] : memref<784x128xbf16, #tpu.memory_space<vmem>>, vector<128x128xbf16>
    %cst_7 = arith.constant dense<0.000000e+00> : vector<8x128xf32>
    %47 = tpu.matmul %45, %46, %cst_7 {dimension_numbers = #tpu.dot_dimension_numbers<[1], [0], [0], [1], [0, 0, 1, 1], [], []>} : vector<8x128xbf16>, vector<128x128xbf16>, vector<8x128xf32> -> vector<8x128xf32>
    %48 = arith.addf %44, %47 : vector<8x128xf32>
    %c0_8 = arith.constant 0 : index
    %c0_9 = arith.constant 0 : index
    %49 = vector.load %arg3[%c0_8, %c0_9] : memref<16x128xf32, #tpu.memory_space<vmem>>, vector<1x128xf32>
    %50 = vector.broadcast %49 : vector<1x128xf32> to vector<8x128xf32>
    %51 = arith.addf %48, %50 : vector<8x128xf32>
    %52 = vector.shape_cast %51 : vector<8x128xf32> to vector<1x8x128xf32>
    %cst_10 = arith.constant dense<0.000000e+00> : vector<1x128xf32>
    %53 = vector.multi_reduction <add>, %52, %cst_10 [1] : vector<1x8x128xf32> to vector<1x128xf32>
    %54 = arith.mulf %52, %52 : vector<1x8x128xf32>
    %cst_11 = arith.constant dense<0.000000e+00> : vector<1x128xf32>
    %55 = vector.multi_reduction <add>, %54, %cst_11 [1] : vector<1x8x128xf32> to vector<1x128xf32>
    %c64_i32 = arith.constant 64 : i32
    %56 = tpu.dynamic_rotate %53 by %c64_i32 dim 1 : vector<1x128xf32>, i32 -> vector<1x128xf32>
    %57 = arith.addf %53, %56 : vector<1x128xf32>
    %c64_i32_12 = arith.constant 64 : i32
    %58 = tpu.dynamic_rotate %55 by %c64_i32_12 dim 1 : vector<1x128xf32>, i32 -> vector<1x128xf32>
    %59 = arith.addf %55, %58 : vector<1x128xf32>
    %cst_13 = arith.constant 6.250000e-02 : f32
    %60 = vector.broadcast %cst_13 : f32 to vector<1x128xf32>
    %61 = arith.mulf %57, %60 : vector<1x128xf32>
    %cst_14 = arith.constant 6.250000e-02 : f32
    %62 = vector.broadcast %cst_14 : f32 to vector<1x128xf32>
    %63 = arith.mulf %59, %62 : vector<1x128xf32>
    %64 = arith.mulf %61, %61 : vector<1x128xf32>
    %65 = arith.subf %63, %64 : vector<1x128xf32>
    %cst_15 = arith.constant 0.000000e+00 : f32
    %66 = vector.broadcast %cst_15 : f32 to vector<1x128xf32>
    %67 = arith.maximumf %65, %66 : vector<1x128xf32>
    %cst_16 = arith.constant 9.99999974E-6 : f32
    %68 = vector.broadcast %cst_16 : f32 to vector<1x128xf32>
    %69 = arith.addf %67, %68 : vector<1x128xf32>
    %70 = math.rsqrt %69 : vector<1x128xf32>
    %c1 = arith.constant 1 : index
    %c0_17 = arith.constant 0 : index
    %71 = vector.load %arg3[%c1, %c0_17] : memref<16x128xf32, #tpu.memory_space<vmem>>, vector<1x128xf32>
    %72 = arith.mulf %70, %71 : vector<1x128xf32>
    %c2 = arith.constant 2 : index
    %c0_18 = arith.constant 0 : index
    %73 = vector.load %arg3[%c2, %c0_18] : memref<16x128xf32, #tpu.memory_space<vmem>>, vector<1x128xf32>
    %74 = arith.mulf %61, %72 : vector<1x128xf32>
    %75 = arith.subf %73, %74 : vector<1x128xf32>
    %76 = vector.shape_cast %72 : vector<1x128xf32> to vector<1x1x128xf32>
    %77 = vector.broadcast %76 : vector<1x1x128xf32> to vector<1x8x128xf32>
    %78 = arith.mulf %52, %77 : vector<1x8x128xf32>
    %79 = vector.shape_cast %75 : vector<1x128xf32> to vector<1x1x128xf32>
    %80 = vector.broadcast %79 : vector<1x1x128xf32> to vector<1x8x128xf32>
    %81 = arith.addf %78, %80 : vector<1x8x128xf32>
    %cst_19 = arith.constant 0.000000e+00 : f32
    %82 = vector.broadcast %cst_19 : f32 to vector<1x8x128xf32>
    %83 = arith.maximumf %81, %82 : vector<1x8x128xf32>
    %84 = vector.shape_cast %83 : vector<1x8x128xf32> to vector<8x128xf32>
    %85 = arith.truncf %84 : vector<8x128xf32> to vector<8x128xbf16>
    %c144 = arith.constant 144 : index
    %c0_20 = arith.constant 0 : index
    %86 = vector.load %arg2[%c144, %c0_20] : memref<784x128xbf16, #tpu.memory_space<vmem>>, vector<128x128xbf16>
    %cst_21 = arith.constant dense<0.000000e+00> : vector<8x128xf32>
    %87 = tpu.matmul %85, %86, %cst_21 {dimension_numbers = #tpu.dot_dimension_numbers<[1], [0], [0], [1], [0, 0, 1, 1], [], []>} : vector<8x128xbf16>, vector<128x128xbf16>, vector<8x128xf32> -> vector<8x128xf32>
    %c3 = arith.constant 3 : index
    %c0_22 = arith.constant 0 : index
    %88 = vector.load %arg3[%c3, %c0_22] : memref<16x128xf32, #tpu.memory_space<vmem>>, vector<1x128xf32>
    %89 = vector.broadcast %88 : vector<1x128xf32> to vector<8x128xf32>
    %90 = arith.addf %87, %89 : vector<8x128xf32>
    %91 = vector.shape_cast %90 : vector<8x128xf32> to vector<1x8x128xf32>
    %cst_23 = arith.constant dense<0.000000e+00> : vector<1x128xf32>
    %92 = vector.multi_reduction <add>, %91, %cst_23 [1] : vector<1x8x128xf32> to vector<1x128xf32>
    %93 = arith.mulf %91, %91 : vector<1x8x128xf32>
    %cst_24 = arith.constant dense<0.000000e+00> : vector<1x128xf32>
    %94 = vector.multi_reduction <add>, %93, %cst_24 [1] : vector<1x8x128xf32> to vector<1x128xf32>
    %c64_i32_25 = arith.constant 64 : i32
    %95 = tpu.dynamic_rotate %92 by %c64_i32_25 dim 1 : vector<1x128xf32>, i32 -> vector<1x128xf32>
    %96 = arith.addf %92, %95 : vector<1x128xf32>
    %c64_i32_26 = arith.constant 64 : i32
    %97 = tpu.dynamic_rotate %94 by %c64_i32_26 dim 1 : vector<1x128xf32>, i32 -> vector<1x128xf32>
    %98 = arith.addf %94, %97 : vector<1x128xf32>
    %cst_27 = arith.constant 6.250000e-02 : f32
    %99 = vector.broadcast %cst_27 : f32 to vector<1x128xf32>
    %100 = arith.mulf %96, %99 : vector<1x128xf32>
    %cst_28 = arith.constant 6.250000e-02 : f32
    %101 = vector.broadcast %cst_28 : f32 to vector<1x128xf32>
    %102 = arith.mulf %98, %101 : vector<1x128xf32>
    %103 = arith.mulf %100, %100 : vector<1x128xf32>
    %104 = arith.subf %102, %103 : vector<1x128xf32>
    %cst_29 = arith.constant 0.000000e+00 : f32
    %105 = vector.broadcast %cst_29 : f32 to vector<1x128xf32>
    %106 = arith.maximumf %104, %105 : vector<1x128xf32>
    %cst_30 = arith.constant 9.99999974E-6 : f32
    %107 = vector.broadcast %cst_30 : f32 to vector<1x128xf32>
    %108 = arith.addf %106, %107 : vector<1x128xf32>
    %109 = math.rsqrt %108 : vector<1x128xf32>
    %c4 = arith.constant 4 : index
    %c0_31 = arith.constant 0 : index
    %110 = vector.load %arg3[%c4, %c0_31] : memref<16x128xf32, #tpu.memory_space<vmem>>, vector<1x128xf32>
    %111 = arith.mulf %109, %110 : vector<1x128xf32>
    %c5 = arith.constant 5 : index
    %c0_32 = arith.constant 0 : index
    %112 = vector.load %arg3[%c5, %c0_32] : memref<16x128xf32, #tpu.memory_space<vmem>>, vector<1x128xf32>
    %113 = arith.mulf %100, %111 : vector<1x128xf32>
    %114 = arith.subf %112, %113 : vector<1x128xf32>
    %115 = vector.shape_cast %111 : vector<1x128xf32> to vector<1x1x128xf32>
    %116 = vector.broadcast %115 : vector<1x1x128xf32> to vector<1x8x128xf32>
    %117 = arith.mulf %91, %116 : vector<1x8x128xf32>
    %118 = vector.shape_cast %114 : vector<1x128xf32> to vector<1x1x128xf32>
    %119 = vector.broadcast %118 : vector<1x1x128xf32> to vector<1x8x128xf32>
    %120 = arith.addf %117, %119 : vector<1x8x128xf32>
    %cst_33 = arith.constant 0.000000e+00 : f32
    %121 = vector.broadcast %cst_33 : f32 to vector<1x8x128xf32>
    %122 = arith.maximumf %120, %121 : vector<1x8x128xf32>
    %123 = vector.shape_cast %122 : vector<1x8x128xf32> to vector<8x128xf32>
    %124 = arith.truncf %123 : vector<8x128xf32> to vector<8x128xbf16>
    %c272 = arith.constant 272 : index
    %c0_34 = arith.constant 0 : index
    %125 = vector.load %arg2[%c272, %c0_34] : memref<784x128xbf16, #tpu.memory_space<vmem>>, vector<128x128xbf16>
    %cst_35 = arith.constant dense<0.000000e+00> : vector<8x128xf32>
    %126 = tpu.matmul %124, %125, %cst_35 {dimension_numbers = #tpu.dot_dimension_numbers<[1], [0], [0], [1], [0, 0, 1, 1], [], []>} : vector<8x128xbf16>, vector<128x128xbf16>, vector<8x128xf32> -> vector<8x128xf32>
    %c6 = arith.constant 6 : index
    %c0_36 = arith.constant 0 : index
    %127 = vector.load %arg3[%c6, %c0_36] : memref<16x128xf32, #tpu.memory_space<vmem>>, vector<1x128xf32>
    %128 = vector.broadcast %127 : vector<1x128xf32> to vector<8x128xf32>
    %129 = arith.addf %126, %128 : vector<8x128xf32>
    %130 = vector.shape_cast %129 : vector<8x128xf32> to vector<1x8x128xf32>
    %cst_37 = arith.constant dense<0.000000e+00> : vector<1x128xf32>
    %131 = vector.multi_reduction <add>, %130, %cst_37 [1] : vector<1x8x128xf32> to vector<1x128xf32>
    %132 = arith.mulf %130, %130 : vector<1x8x128xf32>
    %cst_38 = arith.constant dense<0.000000e+00> : vector<1x128xf32>
    %133 = vector.multi_reduction <add>, %132, %cst_38 [1] : vector<1x8x128xf32> to vector<1x128xf32>
    %c64_i32_39 = arith.constant 64 : i32
    %134 = tpu.dynamic_rotate %131 by %c64_i32_39 dim 1 : vector<1x128xf32>, i32 -> vector<1x128xf32>
    %135 = arith.addf %131, %134 : vector<1x128xf32>
    %c64_i32_40 = arith.constant 64 : i32
    %136 = tpu.dynamic_rotate %133 by %c64_i32_40 dim 1 : vector<1x128xf32>, i32 -> vector<1x128xf32>
    %137 = arith.addf %133, %136 : vector<1x128xf32>
    %cst_41 = arith.constant 6.250000e-02 : f32
    %138 = vector.broadcast %cst_41 : f32 to vector<1x128xf32>
    %139 = arith.mulf %135, %138 : vector<1x128xf32>
    %cst_42 = arith.constant 6.250000e-02 : f32
    %140 = vector.broadcast %cst_42 : f32 to vector<1x128xf32>
    %141 = arith.mulf %137, %140 : vector<1x128xf32>
    %142 = arith.mulf %139, %139 : vector<1x128xf32>
    %143 = arith.subf %141, %142 : vector<1x128xf32>
    %cst_43 = arith.constant 0.000000e+00 : f32
    %144 = vector.broadcast %cst_43 : f32 to vector<1x128xf32>
    %145 = arith.maximumf %143, %144 : vector<1x128xf32>
    %cst_44 = arith.constant 9.99999974E-6 : f32
    %146 = vector.broadcast %cst_44 : f32 to vector<1x128xf32>
    %147 = arith.addf %145, %146 : vector<1x128xf32>
    %148 = math.rsqrt %147 : vector<1x128xf32>
    %c7 = arith.constant 7 : index
    %c0_45 = arith.constant 0 : index
    %149 = vector.load %arg3[%c7, %c0_45] : memref<16x128xf32, #tpu.memory_space<vmem>>, vector<1x128xf32>
    %150 = arith.mulf %148, %149 : vector<1x128xf32>
    %c8 = arith.constant 8 : index
    %c0_46 = arith.constant 0 : index
    %151 = vector.load %arg3[%c8, %c0_46] : memref<16x128xf32, #tpu.memory_space<vmem>>, vector<1x128xf32>
    %152 = arith.mulf %139, %150 : vector<1x128xf32>
    %153 = arith.subf %151, %152 : vector<1x128xf32>
    %154 = vector.shape_cast %150 : vector<1x128xf32> to vector<1x1x128xf32>
    %155 = vector.broadcast %154 : vector<1x1x128xf32> to vector<1x8x128xf32>
    %156 = arith.mulf %130, %155 : vector<1x8x128xf32>
    %157 = vector.shape_cast %153 : vector<1x128xf32> to vector<1x1x128xf32>
    %158 = vector.broadcast %157 : vector<1x1x128xf32> to vector<1x8x128xf32>
    %159 = arith.addf %156, %158 : vector<1x8x128xf32>
    %160 = vector.shape_cast %159 : vector<1x8x128xf32> to vector<8x128xf32>
    %161 = vector.shape_cast %160 : vector<8x128xf32> to vector<1x8x128xf32>
    %cst_47 = arith.constant dense<0xFF800000> : vector<1x128xf32>
    %162 = vector.multi_reduction <maximumf>, %161, %cst_47 [1] : vector<1x8x128xf32> to vector<1x128xf32>
    %c64_i32_48 = arith.constant 64 : i32
    %163 = tpu.dynamic_rotate %162 by %c64_i32_48 dim 1 : vector<1x128xf32>, i32 -> vector<1x128xf32>
    %164 = arith.maximumf %162, %163 : vector<1x128xf32>
    %165 = arith.truncf %164 : vector<1x128xf32> to vector<1x128xbf16>
    %c400 = arith.constant 400 : index
    %c0_49 = arith.constant 0 : index
    %166 = vector.load %arg2[%c400, %c0_49] : memref<784x128xbf16, #tpu.memory_space<vmem>>, vector<128x128xbf16>
    %cst_50 = arith.constant dense<0.000000e+00> : vector<1x128xf32>
    %167 = tpu.matmul %165, %166, %cst_50 {dimension_numbers = #tpu.dot_dimension_numbers<[1], [0], [0], [1], [0, 0, 1, 1], [], []>} : vector<1x128xbf16>, vector<128x128xbf16>, vector<1x128xf32> -> vector<1x128xf32>
    %c9 = arith.constant 9 : index
    %c0_51 = arith.constant 0 : index
    %168 = vector.load %arg3[%c9, %c0_51] : memref<16x128xf32, #tpu.memory_space<vmem>>, vector<1x128xf32>
    %169 = arith.addf %167, %168 : vector<1x128xf32>
    %cst_52 = arith.constant 0.000000e+00 : f32
    %170 = vector.broadcast %cst_52 : f32 to vector<1x128xf32>
    %171 = arith.maximumf %169, %170 : vector<1x128xf32>
    %172 = arith.truncf %171 : vector<1x128xf32> to vector<1x128xbf16>
    %c528 = arith.constant 528 : index
    %c0_53 = arith.constant 0 : index
    %173 = vector.load %arg2[%c528, %c0_53] : memref<784x128xbf16, #tpu.memory_space<vmem>>, vector<128x128xbf16>
    %cst_54 = arith.constant dense<0.000000e+00> : vector<1x128xf32>
    %174 = tpu.matmul %172, %173, %cst_54 {dimension_numbers = #tpu.dot_dimension_numbers<[1], [0], [0], [1], [0, 0, 1, 1], [], []>} : vector<1x128xbf16>, vector<128x128xbf16>, vector<1x128xf32> -> vector<1x128xf32>
    %c10 = arith.constant 10 : index
    %c0_55 = arith.constant 0 : index
    %175 = vector.load %arg3[%c10, %c0_55] : memref<16x128xf32, #tpu.memory_space<vmem>>, vector<1x128xf32>
    %176 = arith.addf %174, %175 : vector<1x128xf32>
    %cst_56 = arith.constant 0.000000e+00 : f32
    %177 = vector.broadcast %cst_56 : f32 to vector<1x128xf32>
    %178 = arith.maximumf %176, %177 : vector<1x128xf32>
    %179 = arith.truncf %178 : vector<1x128xf32> to vector<1x128xbf16>
    %c656 = arith.constant 656 : index
    %c0_57 = arith.constant 0 : index
    %180 = vector.load %arg2[%c656, %c0_57] : memref<784x128xbf16, #tpu.memory_space<vmem>>, vector<128x128xbf16>
    %cst_58 = arith.constant dense<0.000000e+00> : vector<1x128xf32>
    %181 = tpu.matmul %179, %180, %cst_58 {dimension_numbers = #tpu.dot_dimension_numbers<[1], [0], [0], [1], [0, 0, 1, 1], [], []>} : vector<1x128xbf16>, vector<128x128xbf16>, vector<1x128xf32> -> vector<1x128xf32>
    %c11 = arith.constant 11 : index
    %c0_59 = arith.constant 0 : index
    %182 = vector.load %arg3[%c11, %c0_59] : memref<16x128xf32, #tpu.memory_space<vmem>>, vector<1x128xf32>
    %183 = arith.addf %181, %182 : vector<1x128xf32>
    %184 = arith.negf %183 : vector<1x128xf32>
    %185 = math.exp %184 : vector<1x128xf32>
    %cst_60 = arith.constant 1.000000e+00 : f32
    %186 = vector.broadcast %cst_60 : f32 to vector<1x128xf32>
    %187 = arith.addf %186, %185 : vector<1x128xf32>
    %188 = arith.divf %186, %187 : vector<1x128xf32>
    %189 = vector.shape_cast %188 : vector<1x128xf32> to vector<1x1x128xf32>
    %c0_61 = arith.constant 0 : index
    %c0_62 = arith.constant 0 : index
    %c0_63 = arith.constant 0 : index
    %190 = vector.load %arg4[%c0_61, %c0_62, %c0_63] : memref<1x1x128xf32, #tpu.memory_space<vmem>>, vector<1x1x128xf32>
    tpu.vector_store %arg4[%c0_61, %c0_62, %c0_63], %189 {strides = array<i32>} : memref<1x1x128xf32, #tpu.memory_space<vmem>>, vector<1x1x128xf32>,
    return
  }
  func.func @transform_0(%arg0: i32) -> (i32, i32, i32) {
    %c0_i32 = arith.constant 0 : i32
    %c0_i32_0 = arith.constant 0 : i32
    %c0_i32_1 = arith.constant 0 : i32
    return %arg0, %c0_i32, %c0_i32_0 : i32, i32, i32
  }
  func.func @transform_1(%arg0: i32) -> (i32, i32) {
    %c0_i32 = arith.constant 0 : i32
    %c0_i32_0 = arith.constant 0 : i32
    %c0_i32_1 = arith.constant 0 : i32
    return %c0_i32, %c0_i32_0 : i32, i32
  }
  func.func @transform_2(%arg0: i32) -> (i32, i32) {
    %c0_i32 = arith.constant 0 : i32
    %c0_i32_0 = arith.constant 0 : i32
    %c0_i32_1 = arith.constant 0 : i32
    return %c0_i32, %c0_i32_0 : i32, i32
  }
  func.func @transform_3(%arg0: i32) -> (i32, i32, i32) {
    %c0_i32 = arith.constant 0 : i32
    %c0_i32_0 = arith.constant 0 : i32
    %c0_i32_1 = arith.constant 0 : i32
    return %arg0, %c0_i32, %c0_i32_0 : i32, i32, i32
  }
}

</mosaic_0001>

<llo_original>
// kernel: tpu_custom_call.1
$region0: #{tpu_custom_call.1}
  #allocation0 [shape = 'u32[]', space=smem, size = 0x4, offset = 0x4, fixed_abs, tag = 'smem constant byte address 0x4 - core index']
  #allocation1 [shape = 'u32[144,128]{1,0:T(1,128)}', space=vmem, size = 0x12000, scoped, tag = 'internal scratch']
  %s0 = inlined_call_operand.hbm [shape: f32[2,8,16], index: 0, kind: input, shape index: {}]
  %s1 = inlined_call_operand.hbm [shape: bf16[784,128], index: 1, kind: input, shape index: {}]
  %s2 = inlined_call_operand.hbm [shape: f32[16,128], index: 2, kind: input, shape index: {}]
  %s3 = inlined_call_operand.hbm [shape: f32[2,1,128], index: 3, kind: output, shape index: {}]
  %s4 = sld [smem:[#allocation0]]
  $region57: #{tpu_custom_call.1} parent=0
    _
  %s6 = ssub.s32 1, %s4
  %s7 = scalar_select 0, %s6, %s4
  $region1: #{tpu_custom_call.1} parent=0
    #allocation2 [shape = 'u8[8192]{0}', space=vmem, size = 0x2000, scoped, tag = 'input window, operand 0']
    #allocation3 [shape = 's32[2]{0}', space=sflag, size = 0x8, scoped, tag = 'scoped memory for tpu_custom_call.1']
    #allocation4 [shape = 's32[2]{0}', space=sflag, size = 0x8, scoped, tag = 'scoped memory for tpu_custom_call.1']
    #allocation5 [shape = 'u8[200704]{0}', space=vmem, size = 0x31000, scoped, tag = 'input window, operand 1, single buffered']
    #allocation6 [shape = 's32[1]{0}', space=sflag, size = 0x4, scoped, tag = 'scoped memory for tpu_custom_call.1']
    #allocation7 [shape = 'u8[8192]{0}', space=vmem, size = 0x2000, scoped, tag = 'input window, operand 2, single buffered']
    #allocation8 [shape = 'u8[1024]{0}', space=vmem, size = 0x400, scoped, tag = 'output window, operand 0']
    %8 = vsyncpa [#allocation3], 0
    %s9 = scalar_lea.sflag [#allocation3], 1
    %10 = vsyncpa %s9, 0
    %11 = vsyncpa [#allocation6], 0
    %12 = vsyncpa [#allocation4], 0
    %s13 = scalar_lea.sflag [#allocation4], 1
    %14 = vsyncpa %s13, 0
    loop: start=0, step=1, limit=4
    $region2: #{tpu_custom_call.1} parent=1 // loop_pre_header
      _
    $region3: #{tpu_custom_call.1} parent=1 // loop_header
      %s16 = sphi 0, %s20
      %p17 = scmp.ge.s32.totalorder %s16, 4
      %s26 = sphi 0, %s28
      %s29 = sphi 0, %s26
      %s30 = sphi 0, %s29
      %s46 = sphi 0, %s30
      %s50 = sphi 0, %s50
      %s52 = sphi 0, %s50
      %s53 = sphi 0, %s52
      %s67 = sphi 0, %s53
      %s71 = sphi 0, %s71
      %s73 = sphi 0, %s71
      %s74 = sphi 0, %s73
      %s88 = sphi 0, %s74
      %s94 = sphi 0, %s96
      %s97 = sphi 0, %s94
      %s98 = sphi 0, %s97
      %s114 = sphi 0, %s98
    $region4: #{tpu_custom_call.1} parent=1 // loop_header_branch
      %19 = sbr.rel (%p17) target = $region8
    $region5: #{tpu_custom_call.1} parent=1 // loop_body
      %s21 = ssub.s32 %s16, 1
      %s22 = ssub.s32 %s16, 2
      %s23 = sadd.s32 %s16, 1
      %s24 = ssub.s32 %s16, %s23
      %p25 = scmp.eq.s32.totalorder %s24, 0
      %s27 = sadd.s32 %s26, 1
      %s28 = scalar_select %p25, %s26, %s27
      %p31 = pneg %p25
      %p32 = scmp.eq.s32.totalorder %s16, 1
      %p33 = por %p31, %p32
      %p34 = scmp.ne.s32.totalorder %s26, %s29
      %p35 = scmp.eq.s32.totalorder %s16, 0
      %p36 = por %p34, %p35
      %p37 = scmp.ne.s32.totalorder %s26, %s29
      %p38 = scmp.eq.s32.totalorder %s21, 1
      %p39 = por %p37, %p38
      %p40 = scmp.ne.s32.totalorder %s29, %s30
      %p41 = scmp.eq.s32.totalorder %s21, 0
      %p42 = por %p40, %p41
      %p43 = scmp.ne.s32.totalorder %s29, %s30
      %p44 = scmp.eq.s32.totalorder %s22, 1
      %p45 = por %p43, %p44
      %p47 = scmp.ne.s32.totalorder %s30, %s46
      %p48 = scmp.eq.s32.totalorder %s22, 0
      %p49 = por %p47, %p48
      %s51 = sadd.s32 %s50, 1
      %p54 = scmp.eq.s32.totalorder %s16, 1
      %p55 = scmp.ne.s32.totalorder %s50, %s52
      %p56 = scmp.eq.s32.totalorder %s16, 0
      %p57 = por %p55, %p56
      %p58 = scmp.ne.s32.totalorder %s50, %s52
      %p59 = scmp.eq.s32.totalorder %s21, 1
      %p60 = por %p58, %p59
      %p61 = scmp.ne.s32.totalorder %s52, %s53
      %p62 = scmp.eq.s32.totalorder %s21, 0
      %p63 = por %p61, %p62
      %p64 = scmp.ne.s32.totalorder %s52, %s53
      %p65 = scmp.eq.s32.totalorder %s22, 1
      %p66 = por %p64, %p65
      %p68 = scmp.ne.s32.totalorder %s53, %s67
      %p69 = scmp.eq.s32.totalorder %s22, 0
      %p70 = por %p68, %p69
      %s72 = sadd.s32 %s71, 1
      %p75 = scmp.eq.s32.totalorder %s16, 1
      %p76 = scmp.ne.s32.totalorder %s71, %s73
      %p77 = scmp.eq.s32.totalorder %s16, 0
      %p78 = por %p76, %p77
      %p79 = scmp.ne.s32.totalorder %s71, %s73
      %p80 = scmp.eq.s32.totalorder %s21, 1
      %p81 = por %p79, %p80
      %p82 = scmp.ne.s32.totalorder %s73, %s74
      %p83 = scmp.eq.s32.totalorder %s21, 0
      %p84 = por %p82, %p83
      %p85 = scmp.ne.s32.totalorder %s73, %s74
      %p86 = scmp.eq.s32.totalorder %s22, 1
      %p87 = por %p85, %p86
      %p89 = scmp.ne.s32.totalorder %s74, %s88
      %p90 = scmp.eq.s32.totalorder %s22, 0
      %p91 = por %p89, %p90
      %s92 = ssub.s32 %s16, %s23
      %p93 = scmp.eq.s32.totalorder %s92, 0
      %s95 = sadd.s32 %s94, 1
      %s96 = scalar_select %p93, %s94, %s95
      %p99 = pneg %p93
      %p100 = scmp.eq.s32.totalorder %s16, 1
      %p101 = por %p99, %p100
      %p102 = scmp.ne.s32.totalorder %s94, %s97
      %p103 = scmp.eq.s32.totalorder %s16, 0
      %p104 = por %p102, %p103
      %p105 = scmp.ne.s32.totalorder %s94, %s97
      %p106 = scmp.eq.s32.totalorder %s21, 1
      %p107 = por %p105, %p106
      %p108 = scmp.ne.s32.totalorder %s97, %s98
      %p109 = scmp.eq.s32.totalorder %s21, 0
      %p110 = por %p108, %p109
      %p111 = scmp.ne.s32.totalorder %s97, %s98
      %p112 = scmp.eq.s32.totalorder %s22, 1
      %p113 = por %p111, %p112
      %p115 = scmp.ne.s32.totalorder %s98, %s114
      %p116 = scmp.eq.s32.totalorder %s22, 0
      %p117 = por %p115, %p116
      %p118 = scmp.le.s32.totalorder 1, %s16
      %p119 = scmp.lt.s32.totalorder %s16, 3
      %p120 = pnand %p118, %p119
      %p121 = pneg %p120
      // Predicated region
      $region9: #{tpu_custom_call.1} parent=5 // pred_check
        _
      $region10: #{tpu_custom_call.1} parent=5 // pred_check_branch
        %123 = sbr.rel (%p120) target = $region12
      $region11: #{tpu_custom_call.1} parent=5 // pred_region
        %s124 = ssub.s32 %s16, 1
        // Predicated region
        $region13: #{tpu_custom_call.1} parent=11 // pred_check
          %p125 = pneg %p63
        $region14: #{tpu_custom_call.1} parent=11 // pred_check_branch
          %127 = sbr.rel (%p125) target = $region16
        $region15: #{tpu_custom_call.1} parent=11 // pred_region
          %s129 = ssub.s32 6272, 6272
          %130 = vsyncadd [#allocation6], %s129
          %s131 = sshll.u32 [#allocation5], 4
          %s132 = int_to_ptr.vmem [resolvable:$true] %s131
          %137 = dma.hbm_to_vmem [thread:$0]  %s1, 6272, %s132, [#allocation6], 64, 64, 4
        $region16: #{tpu_custom_call.1} parent=11 // pred_fallthru
          _
        // Predicated region
        $region17: #{tpu_custom_call.1} parent=11 // pred_check
          %p138 = pneg %p84
        $region18: #{tpu_custom_call.1} parent=11 // pred_check_branch
          %140 = sbr.rel (%p138) target = $region20
        $region19: #{tpu_custom_call.1} parent=11 // pred_region
          %s142 = ssub.s32 256, 256
          %143 = vsyncadd [#allocation6], %s142
          %s144 = sshll.u32 [#allocation7], 4
          %s145 = int_to_ptr.vmem [resolvable:$true] %s144
          %150 = dma.hbm_to_vmem [thread:$0]  %s2, 256, %s145, [#allocation6], 128, 128, 8
        $region20: #{tpu_custom_call.1} parent=11 // pred_fallthru
          _
      $region12: #{tpu_custom_call.1} parent=5 // pred_fallthru
        _
      %p151 = scmp.lt.s32.totalorder %s16, 2
      // Predicated region
      $region21: #{tpu_custom_call.1} parent=5 // pred_check
        %p152 = pneg %p151
      $region22: #{tpu_custom_call.1} parent=5 // pred_check_branch
        %154 = sbr.rel (%p152) target = $region24
      $region23: #{tpu_custom_call.1} parent=5 // pred_region
        // Predicated region
        $region25: #{tpu_custom_call.1} parent=23 // pred_check
          %p155 = pneg %p36
        $region26: #{tpu_custom_call.1} parent=23 // pred_check_branch
          %157 = sbr.rel (%p155) target = $region28
        $region27: #{tpu_custom_call.1} parent=23 // pred_region
          %s158 = sand.u32 %s26, 1
          %s159 = scalar_lea.sflag [#allocation3], %s158
          %s160 = sand.u32 %s26, 1
          %s161 = smul.addr %s160, 8
          %s162 = scalar_lea.vmem [#allocation2], %s161
          %s164 = ssub.s32 128, 128
          %165 = vsyncadd %s159, %s164
          %s166 = smul.addr %s16, 128
          %s167 = scalar_lea.hbm %s0, %s166
          %s169 = sshll.u32 %s162, 4
          %s170 = int_to_ptr.vmem [resolvable:$true] %s169
          %172 = dma.hbm_to_vmem [thread:$0]  %s167, 128, %s170, %s159
        $region28: #{tpu_custom_call.1} parent=23 // pred_fallthru
          _
      $region24: #{tpu_custom_call.1} parent=5 // pred_fallthru
        _
      %p173 = scmp.le.s32.totalorder 1, %s16
      %p174 = scmp.lt.s32.totalorder %s16, 3
      %p175 = pnand %p173, %p174
      %p176 = pneg %p175
      // Predicated region
      $region29: #{tpu_custom_call.1} parent=5 // pred_check
        _
      $region30: #{tpu_custom_call.1} parent=5 // pred_check_branch
        %178 = sbr.rel (%p175) target = $region32
      $region31: #{tpu_custom_call.1} parent=5 // pred_region
        %s179 = ssub.s32 %s16, 1
        %s180 = sand.u32 %s29, 1
        %s181 = scalar_lea.sflag [#allocation3], %s180
        %s182 = sand.u32 %s29, 1
        %s183 = smul.addr %s182, 8
        %s184 = scalar_lea.vmem [#allocation2], %s183
        // Predicated region
        $region33: #{tpu_custom_call.1} parent=31 // pred_check
          %p185 = pneg %p42
        $region34: #{tpu_custom_call.1} parent=31 // pred_check_branch
          %187 = sbr.rel (%p185) target = $region36
        $region35: #{tpu_custom_call.1} parent=31 // pred_region
          %188 = dma.done %s181, 128
        $region36: #{tpu_custom_call.1} parent=31 // pred_fallthru
          _
        // Predicated region
        $region37: #{tpu_custom_call.1} parent=31 // pred_check
          %p189 = pneg %p63
        $region38: #{tpu_custom_call.1} parent=31 // pred_check_branch
          %191 = sbr.rel (%p189) target = $region40
        $region39: #{tpu_custom_call.1} parent=31 // pred_region
          %192 = dma.done [#allocation6], 6272
        $region40: #{tpu_custom_call.1} parent=31 // pred_fallthru
          _
        // Predicated region
        $region41: #{tpu_custom_call.1} parent=31 // pred_check
          %p193 = pneg %p84
        $region42: #{tpu_custom_call.1} parent=31 // pred_check_branch
          %195 = sbr.rel (%p193) target = $region44
        $region43: #{tpu_custom_call.1} parent=31 // pred_region
          %196 = dma.done [#allocation6], 256
        $region44: #{tpu_custom_call.1} parent=31 // pred_fallthru
          _
        %s197 = sand.u32 %s29, 1
        %s198 = scalar_lea.sflag [#allocation3], %s197
        %s199 = sand.u32 %s29, 1
        %s200 = smul.addr %s199, 8
        %s201 = scalar_lea.vmem [#allocation2], %s200
        %p202 = pneg %p42
        %p203 = pneg %p39
        %p204 = pneg %p63
        %p205 = pneg %p60
        %p206 = pneg %p84
        %p207 = pneg %p81
        %p208 = pneg %p110
        %p209 = pneg %p107
        %s210 = sand.u32 %s97, 1
        %s211 = scalar_lea.sflag [#allocation4], %s210
        %s212 = sand.u32 %s97, 1
        %s213 = scalar_lea.vmem [#allocation8], %s212
        %v215 = vld [vmem:[%s184] sm:$0xff]
        %v216 = vcvt.f32.s32.to.zero.pseudo %v215
        %v217 = vlaneseq
        %v218 = vand.u32 %v217, 127
        %v219 = vadd.s32 %v216, 8
        %220 = vset.pattern.permute.xlu0 4
        %221 = vperm.xlu0 %220, %v219
        %v222 = vpop.permute.xlu0 %221
        %vm223 = vcmp.eq.s32.totalorder %v218, %v222
        %v224 = vadd.s32 %v216, 32
        %225 = vset.pattern.permute.xlu0 3
        %226 = vperm.xlu0 %225, %v224
        %v227 = vpop.permute.xlu0 %226
        %vm228 = vcmp.eq.s32.totalorder %v218, %v227
        %vm229 = vmor %vm223, %vm228
        %v230 = vadd.s32 %v216, 40
        %231 = vset.pattern.permute.xlu0 5
        %232 = vperm.xlu0 %231, %v230
        %v233 = vpop.permute.xlu0 %232
        %vm234 = vcmp.eq.s32.totalorder %v218, %v233
        %vm235 = vmor %vm229, %vm234
        %v236 = vadd.s32 %v216, 72
        %237 = vset.pattern.permute.xlu0 12
        %238 = vperm.xlu0 %237, %v236
        %v239 = vpop.permute.xlu0 %238
        %vm240 = vcmp.eq.s32.totalorder %v218, %v239
        %vm241 = vmor %vm235, %vm240
        %v242 = vadd.s32 %v216, 96
        %243 = vset.pattern.permute.xlu0 11
        %244 = vperm.xlu0 %243, %v242
        %v245 = vpop.permute.xlu0 %244
        %vm246 = vcmp.eq.s32.totalorder %v218, %v245
        %vm247 = vmor %vm241, %vm246
        %v248 = vadd.s32 %v216, 104
        %249 = vset.pattern.permute.xlu0 13
        %250 = vperm.xlu0 %249, %v248
        %v251 = vpop.permute.xlu0 %250
        %vm252 = vcmp.eq.s32.totalorder %v218, %v251
        %vm253 = vmor %vm247, %vm252
        %v254 = vsel %vm253, 1.0, 0.0
        %v255 = vpack.c.bf16 %v215, %v215
        %v256 = vld [vmem:[#allocation5] sm:$0xf]
        %v257 = vld [vmem:[#allocation5 + $0x4] sm:$0xf]
        %v258 = vpack.c.bf16 %v254, %v254
        %v259 = vld [vmem:[#allocation5 + $0x8] sm:$0xf]
        %v260 = vld [vmem:[#allocation5 + $0xc] sm:$0xf]
        %v261 = vld [vmem:[#allocation5 + $0x10] sm:$0xf]
        %v262 = vld [vmem:[#allocation5 + $0x14] sm:$0xf]
        %v263 = vld [vmem:[#allocation5 + $0x18] sm:$0xf]
        %v264 = vld [vmem:[#allocation5 + $0x1c] sm:$0xf]
        %v265 = vld [vmem:[#allocation5 + $0x20] sm:$0xf]
        %v266 = vld [vmem:[#allocation5 + $0x24] sm:$0xf]
        %v267 = vld [vmem:[#allocation5 + $0x28] sm:$0xf]
        %v268 = vld [vmem:[#allocation5 + $0x2c] sm:$0xf]
        %v269 = vld [vmem:[#allocation5 + $0x30] sm:$0xf]
        %v270 = vld [vmem:[#allocation5 + $0x34] sm:$0xf]
        %v271 = vld [vmem:[#allocation5 + $0x38] sm:$0xf]
        %v272 = vld [vmem:[#allocation5 + $0x3c] sm:$0xf]
        %v273 = vld [vmem:[#allocation5 + $0x40] sm:$0xf]
        %v274 = vld [vmem:[#allocation5 + $0x44] sm:$0xf]
        %v291 = vunpack.c.l.b16 %v259
        %v292 = vunpack.c.l.b16 %v260
        %v293 = vunpack.c.l.b16 %v261
        %v294 = vunpack.c.l.b16 %v262
        %v295 = vunpack.c.l.b16 %v263
        %v296 = vunpack.c.l.b16 %v264
        %v297 = vunpack.c.l.b16 %v265
        %v298 = vunpack.c.l.b16 %v266
        %v299 = vunpack.c.l.b16 %v267
        %v300 = vunpack.c.l.b16 %v268
        %v301 = vunpack.c.l.b16 %v269
        %v302 = vunpack.c.l.b16 %v270
        %v303 = vunpack.c.l.b16 %v271
        %v304 = vunpack.c.l.b16 %v272
        %v305 = vunpack.c.l.b16 %v273
        %v306 = vunpack.c.l.b16 %v274
        %v307 = vpack.c.b16 %v292, %v291
        %v308 = vpack.c.b16 %v294, %v293
        %v309 = vpack.c.b16 %v296, %v295
        %v310 = vpack.c.b16 %v298, %v297
        %v311 = vpack.c.b16 %v300, %v299
        %v312 = vpack.c.b16 %v302, %v301
        %v313 = vpack.c.b16 %v304, %v303
        %v314 = vpack.c.b16 %v306, %v305
        %323 = vmatprep.subr.bf16.mxu0 0
        %324 = vmatpush1.bf16.msra.mxu0 %v307
        %325 = vmatprep.subr.bf16.mxu0 0
        %326 = vmatpush1.bf16.msra.mxu0 %v308
        %327 = vmatprep.subr.bf16.mxu0 0
        %328 = vmatpush1.bf16.msra.mxu0 %v309
        %329 = vmatprep.subr.bf16.mxu0 0
        %330 = vmatpush1.bf16.msra.mxu0 %v310
        %331 = vmatprep.subr.bf16.mxu0 0
        %332 = vmatpush1.bf16.msra.mxu0 %v311
        %333 = vmatprep.subr.bf16.mxu0 0
        %334 = vmatpush1.bf16.msra.mxu0 %v312
        %335 = vmatprep.subr.bf16.mxu0 0
        %336 = vmatpush1.bf16.msra.mxu0 %v313
        %337 = vmatprep.subr.bf16.mxu0 0
        %338 = vmatpush1.bf16.msra.mxu0 %v314
        %339 = vmatprep.subr.bf16.mxu0 0
        %340 = vmatpush1.bf16.msra.mxu0 0
        %341 = vmatprep.subr.bf16.mxu0 0
        %342 = vmatpush1.bf16.msra.mxu0 0
        %343 = vmatprep.subr.bf16.mxu0 0
        %344 = vmatpush1.bf16.msra.mxu0 0
        %345 = vmatprep.subr.bf16.mxu0 0
        %346 = vmatpush1.bf16.msra.mxu0 0
        %347 = vmatprep.subr.bf16.mxu0 0
        %348 = vmatpush1.bf16.msra.mxu0 0
        %349 = vmatprep.subr.bf16.mxu0 0
        %350 = vmatpush1.bf16.msra.mxu0 0
        %351 = vmatprep.subr.bf16.mxu0 0
        %352 = vmatpush1.bf16.msra.mxu0 0
        %353 = vmatprep.subr.bf16.mxu0 0
        %354 = vmatpush1.bf16.msra.mxu0 0
        %355 = vmatprep.mubr.bf16.mxu0 0
        %356 = vmatmul.mubr.bf16.gmra.mrb[0].mxu0 %v258
        %v357 = vpop.f32.mrb[0].mxu0
        %v358 = vadd.f32 0.0, %v357
        %v359 = vpop.f32.mrb[0].mxu0
        %v360 = vpop.f32.mrb[0].mxu0
        %v361 = vpop.f32.mrb[0].mxu0
        %362 = vdwg.mxu0
        %v365 = vunpack.c.l.b16 %v256
        %v366 = vunpack.c.l.b16 %v257
        %v367 = vpack.c.b16 %v366, %v365
        %vm369 = vcmask 130048
        %v371 = vsel %vm369, %v255, 0
        %373 = vmatprep.subr.bf16.mxu0 0
        %374 = vmatpush1.bf16.msra.mxu0 %v367
        %375 = vmatprep.subr.bf16.mxu0 0
        %376 = vmatpush1.bf16.msra.mxu0 0
        %377 = vmatprep.subr.bf16.mxu0 0
        %378 = vmatpush1.bf16.msra.mxu0 0
        %379 = vmatprep.subr.bf16.mxu0 0
        %380 = vmatpush1.bf16.msra.mxu0 0
        %381 = vmatprep.subr.bf16.mxu0 0
        %382 = vmatpush1.bf16.msra.mxu0 0
        %383 = vmatprep.subr.bf16.mxu0 0
        %384 = vmatpush1.bf16.msra.mxu0 0
        %385 = vmatprep.subr.bf16.mxu0 0
        %386 = vmatpush1.bf16.msra.mxu0 0
        %387 = vmatprep.subr.bf16.mxu0 0
        %388 = vmatpush1.bf16.msra.mxu0 0
        %389 = vmatprep.subr.bf16.mxu0 0
        %390 = vmatpush1.bf16.msra.mxu0 0
        %391 = vmatprep.subr.bf16.mxu0 0
        %392 = vmatpush1.bf16.msra.mxu0 0
        %393 = vmatprep.subr.bf16.mxu0 0
        %394 = vmatpush1.bf16.msra.mxu0 0
        %395 = vmatprep.subr.bf16.mxu0 0
        %396 = vmatpush1.bf16.msra.mxu0 0
        %397 = vmatprep.subr.bf16.mxu0 0
        %398 = vmatpush1.bf16.msra.mxu0 0
        %399 = vmatprep.subr.bf16.mxu0 0
        %400 = vmatpush1.bf16.msra.mxu0 0
        %401 = vmatprep.subr.bf16.mxu0 0
        %402 = vmatpush1.bf16.msra.mxu0 0
        %403 = vmatprep.subr.bf16.mxu0 0
        %404 = vmatpush1.bf16.msra.mxu0 0
        %405 = vmatprep.mubr.bf16.mxu0 0
        %406 = vmatmul.mubr.bf16.gmra.mrb[0].mxu0 %v371
        %v407 = vpop.f32.mrb[0].mxu0
        %v408 = vadd.f32 %v358, %v407
        %v409 = vpop.f32.mrb[0].mxu0
        %v410 = vpop.f32.mrb[0].mxu0
        %v411 = vpop.f32.mrb[0].mxu0
        %412 = vdwg.mxu0
        %v413 = vld [vmem:[#allocation7] sm:$0x1]
        %v414 = vlaneseq
        %v415 = vshrl.u32 %v414, 7
        %v416 = vsub.s32 0, %v415
        %v417 = vrot.slane %v413, %v416
        %v418 = vadd.f32 %v408, %v417
        %v419 = vrot.slane %v418, 4
        %v420 = vadd.f32 %v418, %v419
        %v421 = vrot.slane %v420, 2
        %v422 = vadd.f32 %v420, %v421
        %v423 = vrot.slane %v422, 1
        %v424 = vadd.f32 %v422, %v423
        %v425 = vmul.f32 %v418, %v418
        %v426 = vrot.slane %v425, 4
        %v427 = vadd.f32 %v425, %v426
        %v428 = vrot.slane %v427, 2
        %v429 = vadd.f32 %v427, %v428
        %v430 = vrot.slane %v429, 1
        %v431 = vadd.f32 %v429, %v430
        %432 = vrot.lane.b32.xlu0 %v424, 64
        %v433 = vpop.permute.xlu0 %432
        %v434 = vadd.f32 %v424, %v433
        %435 = vrot.lane.b32.xlu0 %v431, 64
        %v436 = vpop.permute.xlu0 %435
        %v437 = vadd.f32 %v431, %v436
        %v438 = vmul.f32 %v434, 0.0625
        %v439 = vmul.f32 %v437, 0.0625
        %v440 = vmul.f32 %v438, %v438
        %v441 = vsub.f32 %v439, %v440
        %v442 = vmax.f32 %v441, 0.0
        %v443 = vadd.f32 %v442, 1e-05
        %v444 = vrsqrt.pop %v443
        %v445 = vld [vmem:[#allocation7 + $0x1] sm:$0x1]
        %v446 = vmul.f32 %v444, %v445
        %v447 = vld [vmem:[#allocation7 + $0x2] sm:$0x1]
        %v448 = vmul.f32 %v438, %v446
        %v449 = vsub.f32 %v447, %v448
        %v450 = vlaneseq
        %v451 = vshrl.u32 %v450, 7
        %v452 = vsub.s32 0, %v451
        %v453 = vrot.slane %v446, %v452
        %v454 = vmul.f32 %v418, %v453
        %v455 = vlaneseq
        %v456 = vshrl.u32 %v455, 7
        %v457 = vsub.s32 0, %v456
        %v458 = vrot.slane %v449, %v457
        %v459 = vadd.f32 %v454, %v458
        %v460 = vmax.f32 %v459, 0.0
        %v461 = vpack.c.bf16 %v460, %v460
        %v462 = vld [vmem:[#allocation5 + $0x48] sm:$0xf]
        %v463 = vld [vmem:[#allocation5 + $0x4c] sm:$0xf]
        %v464 = vld [vmem:[#allocation5 + $0x50] sm:$0xf]
        %v465 = vld [vmem:[#allocation5 + $0x54] sm:$0xf]
        %v466 = vld [vmem:[#allocation5 + $0x58] sm:$0xf]
        %v467 = vld [vmem:[#allocation5 + $0x5c] sm:$0xf]
        %v468 = vld [vmem:[#allocation5 + $0x60] sm:$0xf]
        %v469 = vld [vmem:[#allocation5 + $0x64] sm:$0xf]
        %v470 = vld [vmem:[#allocation5 + $0x68] sm:$0xf]
        %v471 = vld [vmem:[#allocation5 + $0x6c] sm:$0xf]
        %v472 = vld [vmem:[#allocation5 + $0x70] sm:$0xf]
        %v473 = vld [vmem:[#allocation5 + $0x74] sm:$0xf]
        %v474 = vld [vmem:[#allocation5 + $0x78] sm:$0xf]
        %v475 = vld [vmem:[#allocation5 + $0x7c] sm:$0xf]
        %v476 = vld [vmem:[#allocation5 + $0x80] sm:$0xf]
        %v477 = vld [vmem:[#allocation5 + $0x84] sm:$0xf]
        %v478 = vld [vmem:[#allocation7 + $0x3] sm:$0x1]
        %v479 = vlaneseq
        %v480 = vshrl.u32 %v479, 7
        %v481 = vsub.s32 0, %v480
        %v482 = vrot.slane %v478, %v481
        %v499 = vunpack.c.l.b16 %v462
        %v500 = vunpack.c.l.b16 %v463
        %v501 = vunpack.c.l.b16 %v464
        %v502 = vunpack.c.l.b16 %v465
        %v503 = vunpack.c.l.b16 %v466
        %v504 = vunpack.c.l.b16 %v467
        %v505 = vunpack.c.l.b16 %v468
        %v506 = vunpack.c.l.b16 %v469
        %v507 = vunpack.c.l.b16 %v470
        %v508 = vunpack.c.l.b16 %v471
        %v509 = vunpack.c.l.b16 %v472
        %v510 = vunpack.c.l.b16 %v473
        %v511 = vunpack.c.l.b16 %v474
        %v512 = vunpack.c.l.b16 %v475
        %v513 = vunpack.c.l.b16 %v476
        %v514 = vunpack.c.l.b16 %v477
        %v515 = vpack.c.b16 %v500, %v499
        %v516 = vpack.c.b16 %v502, %v501
        %v517 = vpack.c.b16 %v504, %v503
        %v518 = vpack.c.b16 %v506, %v505
        %v519 = vpack.c.b16 %v508, %v507
        %v520 = vpack.c.b16 %v510, %v509
        %v521 = vpack.c.b16 %v512, %v511
        %v522 = vpack.c.b16 %v514, %v513
        %531 = vmatprep.subr.bf16.mxu0 0
        %532 = vmatpush1.bf16.msra.mxu0 %v515
        %533 = vmatprep.subr.bf16.mxu0 0
        %534 = vmatpush1.bf16.msra.mxu0 %v516
        %535 = vmatprep.subr.bf16.mxu0 0
        %536 = vmatpush1.bf16.msra.mxu0 %v517
        %537 = vmatprep.subr.bf16.mxu0 0
        %538 = vmatpush1.bf16.msra.mxu0 %v518
        %539 = vmatprep.subr.bf16.mxu0 0
        %540 = vmatpush1.bf16.msra.mxu0 %v519
        %541 = vmatprep.subr.bf16.mxu0 0
        %542 = vmatpush1.bf16.msra.mxu0 %v520
        %543 = vmatprep.subr.bf16.mxu0 0
        %544 = vmatpush1.bf16.msra.mxu0 %v521
        %545 = vmatprep.subr.bf16.mxu0 0
        %546 = vmatpush1.bf16.msra.mxu0 %v522
        %547 = vmatprep.subr.bf16.mxu0 0
        %548 = vmatpush1.bf16.msra.mxu0 0
        %549 = vmatprep.subr.bf16.mxu0 0
        %550 = vmatpush1.bf16.msra.mxu0 0
        %551 = vmatprep.subr.bf16.mxu0 0
        %552 = vmatpush1.bf16.msra.mxu0 0
        %553 = vmatprep.subr.bf16.mxu0 0
        %554 = vmatpush1.bf16.msra.mxu0 0
        %555 = vmatprep.subr.bf16.mxu0 0
        %556 = vmatpush1.bf16.msra.mxu0 0
        %557 = vmatprep.subr.bf16.mxu0 0
        %558 = vmatpush1.bf16.msra.mxu0 0
        %559 = vmatprep.subr.bf16.mxu0 0
        %560 = vmatpush1.bf16.msra.mxu0 0
        %561 = vmatprep.subr.bf16.mxu0 0
        %562 = vmatpush1.bf16.msra.mxu0 0
        %563 = vmatprep.mubr.bf16.mxu0 0
        %564 = vmatmul.mubr.bf16.gmra.mrb[0].mxu0 %v461
        %v565 = vpop.f32.mrb[0].mxu0
        %v566 = vadd.f32 %v482, %v565
        %v567 = vpop.f32.mrb[0].mxu0
        %v568 = vpop.f32.mrb[0].mxu0
        %v569 = vpop.f32.mrb[0].mxu0
        %570 = vdwg.mxu0
        %v571 = vrot.slane %v566, 4
        %v572 = vadd.f32 %v566, %v571
        %v573 = vrot.slane %v572, 2
        %v574 = vadd.f32 %v572, %v573
        %v575 = vrot.slane %v574, 1
        %v576 = vadd.f32 %v574, %v575
        %v577 = vmul.f32 %v566, %v566
        %v578 = vrot.slane %v577, 4
        %v579 = vadd.f32 %v577, %v578
        %v580 = vrot.slane %v579, 2
        %v581 = vadd.f32 %v579, %v580
        %v582 = vrot.slane %v581, 1
        %v583 = vadd.f32 %v581, %v582
        %584 = vrot.lane.b32.xlu0 %v576, 64
        %v585 = vpop.permute.xlu0 %584
        %v586 = vadd.f32 %v576, %v585
        %587 = vrot.lane.b32.xlu0 %v583, 64
        %v588 = vpop.permute.xlu0 %587
        %v589 = vadd.f32 %v583, %v588
        %v590 = vmul.f32 %v586, 0.0625
        %v591 = vmul.f32 %v589, 0.0625
        %v592 = vmul.f32 %v590, %v590
        %v593 = vsub.f32 %v591, %v592
        %v594 = vmax.f32 %v593, 0.0
        %v595 = vadd.f32 %v594, 1e-05
        %v596 = vrsqrt.pop %v595
        %v597 = vld [vmem:[#allocation7 + $0x4] sm:$0x1]
        %v598 = vmul.f32 %v596, %v597
        %v599 = vld [vmem:[#allocation7 + $0x5] sm:$0x1]
        %v600 = vmul.f32 %v590, %v598
        %v601 = vsub.f32 %v599, %v600
        %v602 = vlaneseq
        %v603 = vshrl.u32 %v602, 7
        %v604 = vsub.s32 0, %v603
        %v605 = vrot.slane %v598, %v604
        %v606 = vmul.f32 %v566, %v605
        %v607 = vlaneseq
        %v608 = vshrl.u32 %v607, 7
        %v609 = vsub.s32 0, %v608
        %v610 = vrot.slane %v601, %v609
        %v611 = vadd.f32 %v606, %v610
        %v612 = vmax.f32 %v611, 0.0
        %v613 = vpack.c.bf16 %v612, %v612
        %v614 = vld [vmem:[#allocation5 + $0x88] sm:$0xf]
        %v615 = vld [vmem:[#allocation5 + $0x8c] sm:$0xf]
        %v616 = vld [vmem:[#allocation5 + $0x90] sm:$0xf]
        %v617 = vld [vmem:[#allocation5 + $0x94] sm:$0xf]
        %v618 = vld [vmem:[#allocation5 + $0x98] sm:$0xf]
        %v619 = vld [vmem:[#allocation5 + $0x9c] sm:$0xf]
        %v620 = vld [vmem:[#allocation5 + $0xa0] sm:$0xf]
        %v621 = vld [vmem:[#allocation5 + $0xa4] sm:$0xf]
        %v622 = vld [vmem:[#allocation5 + $0xa8] sm:$0xf]
        %v623 = vld [vmem:[#allocation5 + $0xac] sm:$0xf]
        %v624 = vld [vmem:[#allocation5 + $0xb0] sm:$0xf]
        %v625 = vld [vmem:[#allocation5 + $0xb4] sm:$0xf]
        %v626 = vld [vmem:[#allocation5 + $0xb8] sm:$0xf]
        %v627 = vld [vmem:[#allocation5 + $0xbc] sm:$0xf]
        %v628 = vld [vmem:[#allocation5 + $0xc0] sm:$0xf]
        %v629 = vld [vmem:[#allocation5 + $0xc4] sm:$0xf]
        %v630 = vld [vmem:[#allocation7 + $0x6] sm:$0x1]
        %v631 = vlaneseq
        %v632 = vshrl.u32 %v631, 7
        %v633 = vsub.s32 0, %v632
        %v634 = vrot.slane %v630, %v633
        %v651 = vunpack.c.l.b16 %v614
        %v652 = vunpack.c.l.b16 %v615
        %v653 = vunpack.c.l.b16 %v616
        %v654 = vunpack.c.l.b16 %v617
        %v655 = vunpack.c.l.b16 %v618
        %v656 = vunpack.c.l.b16 %v619
        %v657 = vunpack.c.l.b16 %v620
        %v658 = vunpack.c.l.b16 %v621
        %v659 = vunpack.c.l.b16 %v622
        %v660 = vunpack.c.l.b16 %v623
        %v661 = vunpack.c.l.b16 %v624
        %v662 = vunpack.c.l.b16 %v625
        %v663 = vunpack.c.l.b16 %v626
        %v664 = vunpack.c.l.b16 %v627
        %v665 = vunpack.c.l.b16 %v628
        %v666 = vunpack.c.l.b16 %v629
        %v667 = vpack.c.b16 %v652, %v651
        %v668 = vpack.c.b16 %v654, %v653
        %v669 = vpack.c.b16 %v656, %v655
        %v670 = vpack.c.b16 %v658, %v657
        %v671 = vpack.c.b16 %v660, %v659
        %v672 = vpack.c.b16 %v662, %v661
        %v673 = vpack.c.b16 %v664, %v663
        %v674 = vpack.c.b16 %v666, %v665
        %683 = vmatprep.subr.bf16.mxu0 0
        %684 = vmatpush1.bf16.msra.mxu0 %v667
        %685 = vmatprep.subr.bf16.mxu0 0
        %686 = vmatpush1.bf16.msra.mxu0 %v668
        %687 = vmatprep.subr.bf16.mxu0 0
        %688 = vmatpush1.bf16.msra.mxu0 %v669
        %689 = vmatprep.subr.bf16.mxu0 0
        %690 = vmatpush1.bf16.msra.mxu0 %v670
        %691 = vmatprep.subr.bf16.mxu0 0
        %692 = vmatpush1.bf16.msra.mxu0 %v671
        %693 = vmatprep.subr.bf16.mxu0 0
        %694 = vmatpush1.bf16.msra.mxu0 %v672
        %695 = vmatprep.subr.bf16.mxu0 0
        %696 = vmatpush1.bf16.msra.mxu0 %v673
        %697 = vmatprep.subr.bf16.mxu0 0
        %698 = vmatpush1.bf16.msra.mxu0 %v674
        %699 = vmatprep.subr.bf16.mxu0 0
        %700 = vmatpush1.bf16.msra.mxu0 0
        %701 = vmatprep.subr.bf16.mxu0 0
        %702 = vmatpush1.bf16.msra.mxu0 0
        %703 = vmatprep.subr.bf16.mxu0 0
        %704 = vmatpush1.bf16.msra.mxu0 0
        %705 = vmatprep.subr.bf16.mxu0 0
        %706 = vmatpush1.bf16.msra.mxu0 0
        %707 = vmatprep.subr.bf16.mxu0 0
        %708 = vmatpush1.bf16.msra.mxu0 0
        %709 = vmatprep.subr.bf16.mxu0 0
        %710 = vmatpush1.bf16.msra.mxu0 0
        %711 = vmatprep.subr.bf16.mxu0 0
        %712 = vmatpush1.bf16.msra.mxu0 0
        %713 = vmatprep.subr.bf16.mxu0 0
        %714 = vmatpush1.bf16.msra.mxu0 0
        %715 = vmatprep.mubr.bf16.mxu0 0
        %716 = vmatmul.mubr.bf16.gmra.mrb[0].mxu0 %v613
        %v717 = vpop.f32.mrb[0].mxu0
        %v718 = vadd.f32 %v634, %v717
        %v719 = vpop.f32.mrb[0].mxu0
        %v720 = vpop.f32.mrb[0].mxu0
        %v721 = vpop.f32.mrb[0].mxu0
        %722 = vdwg.mxu0
        %v723 = vrot.slane %v718, 4
        %v724 = vadd.f32 %v718, %v723
        %v725 = vrot.slane %v724, 2
        %v726 = vadd.f32 %v724, %v725
        %v727 = vrot.slane %v726, 1
        %v728 = vadd.f32 %v726, %v727
        %v729 = vmul.f32 %v718, %v718
        %v730 = vrot.slane %v729, 4
        %v731 = vadd.f32 %v729, %v730
        %v732 = vrot.slane %v731, 2
        %v733 = vadd.f32 %v731, %v732
        %v734 = vrot.slane %v733, 1
        %v735 = vadd.f32 %v733, %v734
        %736 = vrot.lane.b32.xlu0 %v728, 64
        %v737 = vpop.permute.xlu0 %736
        %v738 = vadd.f32 %v728, %v737
        %739 = vrot.lane.b32.xlu0 %v735, 64
        %v740 = vpop.permute.xlu0 %739
        %v741 = vadd.f32 %v735, %v740
        %v742 = vmul.f32 %v738, 0.0625
        %v743 = vmul.f32 %v741, 0.0625
        %v744 = vmul.f32 %v742, %v742
        %v745 = vsub.f32 %v743, %v744
        %v746 = vmax.f32 %v745, 0.0
        %v747 = vadd.f32 %v746, 1e-05
        %v748 = vrsqrt.pop %v747
        %v749 = vld [vmem:[#allocation7 + $0x7] sm:$0x1]
        %v750 = vmul.f32 %v748, %v749
        %v751 = vld [vmem:[#allocation7 + $0x8] sm:$0x1]
        %v752 = vmul.f32 %v742, %v750
        %v753 = vsub.f32 %v751, %v752
        %v754 = vlaneseq
        %v755 = vshrl.u32 %v754, 7
        %v756 = vsub.s32 0, %v755
        %v757 = vrot.slane %v750, %v756
        %v758 = vmul.f32 %v718, %v757
        %v759 = vlaneseq
        %v760 = vshrl.u32 %v759, 7
        %v761 = vsub.s32 0, %v760
        %v762 = vrot.slane %v753, %v761
        %v763 = vadd.f32 %v758, %v762
        %v764 = vrot.slane %v763, 4
        %v765 = vmax.f32 %v763, %v764
        %v766 = vrot.slane %v765, 2
        %v767 = vmax.f32 %v765, %v766
        %v768 = vrot.slane %v767, 1
        %v769 = vmax.f32 %v767, %v768
        %770 = vrot.lane.b32.xlu0 %v769, 64
        %v771 = vpop.permute.xlu0 %770
        %v772 = vmax.f32 %v769, %v771
        %v773 = vpack.c.bf16 %v772, %v772
        %v774 = vld [vmem:[#allocation5 + $0xc8] sm:$0xf]
        %v775 = vld [vmem:[#allocation5 + $0xcc] sm:$0xf]
        %v776 = vld [vmem:[#allocation5 + $0xd0] sm:$0xf]
        %v777 = vld [vmem:[#allocation5 + $0xd4] sm:$0xf]
        %v778 = vld [vmem:[#allocation5 + $0xd8] sm:$0xf]
        %v779 = vld [vmem:[#allocation5 + $0xdc] sm:$0xf]
        %v780 = vld [vmem:[#allocation5 + $0xe0] sm:$0xf]
        %v781 = vld [vmem:[#allocation5 + $0xe4] sm:$0xf]
        %v782 = vld [vmem:[#allocation5 + $0xe8] sm:$0xf]
        %v783 = vld [vmem:[#allocation5 + $0xec] sm:$0xf]
        %v784 = vld [vmem:[#allocation5 + $0xf0] sm:$0xf]
        %v785 = vld [vmem:[#allocation5 + $0xf4] sm:$0xf]
        %v786 = vld [vmem:[#allocation5 + $0xf8] sm:$0xf]
        %v787 = vld [vmem:[#allocation5 + $0xfc] sm:$0xf]
        %v788 = vld [vmem:[#allocation5 + $0x100] sm:$0xf]
        %v789 = vld [vmem:[#allocation5 + $0x104] sm:$0xf]
        %v790 = vld [vmem:[#allocation7 + $0x9] sm:$0x1]
        %v807 = vunpack.c.l.b16 %v774
        %v808 = vunpack.c.l.b16 %v775
        %v809 = vunpack.c.l.b16 %v776
        %v810 = vunpack.c.l.b16 %v777
        %v811 = vunpack.c.l.b16 %v778
        %v812 = vunpack.c.l.b16 %v779
        %v813 = vunpack.c.l.b16 %v780
        %v814 = vunpack.c.l.b16 %v781
        %v815 = vunpack.c.l.b16 %v782
        %v816 = vunpack.c.l.b16 %v783
        %v817 = vunpack.c.l.b16 %v784
        %v818 = vunpack.c.l.b16 %v785
        %v819 = vunpack.c.l.b16 %v786
        %v820 = vunpack.c.l.b16 %v787
        %v821 = vunpack.c.l.b16 %v788
        %v822 = vunpack.c.l.b16 %v789
        %v823 = vpack.c.b16 %v808, %v807
        %v824 = vpack.c.b16 %v810, %v809
        %v825 = vpack.c.b16 %v812, %v811
        %v826 = vpack.c.b16 %v814, %v813
        %v827 = vpack.c.b16 %v816, %v815
        %v828 = vpack.c.b16 %v818, %v817
        %v829 = vpack.c.b16 %v820, %v819
        %v830 = vpack.c.b16 %v822, %v821
        %839 = vmatprep.subr.bf16.mxu0 0
        %840 = vmatpush1.bf16.msra.mxu0 %v823
        %841 = vmatprep.subr.bf16.mxu0 0
        %842 = vmatpush1.bf16.msra.mxu0 %v824
        %843 = vmatprep.subr.bf16.mxu0 0
        %844 = vmatpush1.bf16.msra.mxu0 %v825
        %845 = vmatprep.subr.bf16.mxu0 0
        %846 = vmatpush1.bf16.msra.mxu0 %v826
        %847 = vmatprep.subr.bf16.mxu0 0
        %848 = vmatpush1.bf16.msra.mxu0 %v827
        %849 = vmatprep.subr.bf16.mxu0 0
        %850 = vmatpush1.bf16.msra.mxu0 %v828
        %851 = vmatprep.subr.bf16.mxu0 0
        %852 = vmatpush1.bf16.msra.mxu0 %v829
        %853 = vmatprep.subr.bf16.mxu0 0
        %854 = vmatpush1.bf16.msra.mxu0 %v830
        %855 = vmatprep.subr.bf16.mxu0 0
        %856 = vmatpush1.bf16.msra.mxu0 0
        %857 = vmatprep.subr.bf16.mxu0 0
        %858 = vmatpush1.bf16.msra.mxu0 0
        %859 = vmatprep.subr.bf16.mxu0 0
        %860 = vmatpush1.bf16.msra.mxu0 0
        %861 = vmatprep.subr.bf16.mxu0 0
        %862 = vmatpush1.bf16.msra.mxu0 0
        %863 = vmatprep.subr.bf16.mxu0 0
        %864 = vmatpush1.bf16.msra.mxu0 0
        %865 = vmatprep.subr.bf16.mxu0 0
        %866 = vmatpush1.bf16.msra.mxu0 0
        %867 = vmatprep.subr.bf16.mxu0 0
        %868 = vmatpush1.bf16.msra.mxu0 0
        %869 = vmatprep.subr.bf16.mxu0 0
        %870 = vmatpush1.bf16.msra.mxu0 0
        %871 = vmatprep.mubr.bf16.mxu0 0
        %872 = vmatmul.mubr.bf16.gmra.mrb[0].mxu0 %v773
        %v873 = vpop.f32.mrb[0].mxu0
        %v874 = vadd.f32 %v790, %v873
        %v875 = vpop.f32.mrb[0].mxu0
        %v876 = vpop.f32.mrb[0].mxu0
        %v877 = vpop.f32.mrb[0].mxu0
        %878 = vdwg.mxu0
        %v879 = vmax.f32 %v874, 0.0
        %v880 = vpack.c.bf16 %v879, %v879
        %v881 = vld [vmem:[#allocation5 + $0x108] sm:$0xf]
        %v882 = vld [vmem:[#allocation5 + $0x10c] sm:$0xf]
        %v883 = vld [vmem:[#allocation5 + $0x110] sm:$0xf]
        %v884 = vld [vmem:[#allocation5 + $0x114] sm:$0xf]
        %v885 = vld [vmem:[#allocation5 + $0x118] sm:$0xf]
        %v886 = vld [vmem:[#allocation5 + $0x11c] sm:$0xf]
        %v887 = vld [vmem:[#allocation5 + $0x120] sm:$0xf]
        %v888 = vld [vmem:[#allocation5 + $0x124] sm:$0xf]
        %v889 = vld [vmem:[#allocation5 + $0x128] sm:$0xf]
        %v890 = vld [vmem:[#allocation5 + $0x12c] sm:$0xf]
        %v891 = vld [vmem:[#allocation5 + $0x130] sm:$0xf]
        %v892 = vld [vmem:[#allocation5 + $0x134] sm:$0xf]
        %v893 = vld [vmem:[#allocation5 + $0x138] sm:$0xf]
        %v894 = vld [vmem:[#allocation5 + $0x13c] sm:$0xf]
        %v895 = vld [vmem:[#allocation5 + $0x140] sm:$0xf]
        %v896 = vld [vmem:[#allocation5 + $0x144] sm:$0xf]
        %v897 = vld [vmem:[#allocation7 + $0xa] sm:$0x1]
        %v914 = vunpack.c.l.b16 %v881
        %v915 = vunpack.c.l.b16 %v882
        %v916 = vunpack.c.l.b16 %v883
        %v917 = vunpack.c.l.b16 %v884
        %v918 = vunpack.c.l.b16 %v885
        %v919 = vunpack.c.l.b16 %v886
        %v920 = vunpack.c.l.b16 %v887
        %v921 = vunpack.c.l.b16 %v888
        %v922 = vunpack.c.l.b16 %v889
        %v923 = vunpack.c.l.b16 %v890
        %v924 = vunpack.c.l.b16 %v891
        %v925 = vunpack.c.l.b16 %v892
        %v926 = vunpack.c.l.b16 %v893
        %v927 = vunpack.c.l.b16 %v894
        %v928 = vunpack.c.l.b16 %v895
        %v929 = vunpack.c.l.b16 %v896
        %v930 = vpack.c.b16 %v915, %v914
        %v931 = vpack.c.b16 %v917, %v916
        %v932 = vpack.c.b16 %v919, %v918
        %v933 = vpack.c.b16 %v921, %v920
        %v934 = vpack.c.b16 %v923, %v922
        %v935 = vpack.c.b16 %v925, %v924
        %v936 = vpack.c.b16 %v927, %v926
        %v937 = vpack.c.b16 %v929, %v928
        %946 = vmatprep.subr.bf16.mxu0 0
        %947 = vmatpush1.bf16.msra.mxu0 %v930
        %948 = vmatprep.subr.bf16.mxu0 0
        %949 = vmatpush1.bf16.msra.mxu0 %v931
        %950 = vmatprep.subr.bf16.mxu0 0
        %951 = vmatpush1.bf16.msra.mxu0 %v932
        %952 = vmatprep.subr.bf16.mxu0 0
        %953 = vmatpush1.bf16.msra.mxu0 %v933
        %954 = vmatprep.subr.bf16.mxu0 0
        %955 = vmatpush1.bf16.msra.mxu0 %v934
        %956 = vmatprep.subr.bf16.mxu0 0
        %957 = vmatpush1.bf16.msra.mxu0 %v935
        %958 = vmatprep.subr.bf16.mxu0 0
        %959 = vmatpush1.bf16.msra.mxu0 %v936
        %960 = vmatprep.subr.bf16.mxu0 0
        %961 = vmatpush1.bf16.msra.mxu0 %v937
        %962 = vmatprep.subr.bf16.mxu0 0
        %963 = vmatpush1.bf16.msra.mxu0 0
        %964 = vmatprep.subr.bf16.mxu0 0
        %965 = vmatpush1.bf16.msra.mxu0 0
        %966 = vmatprep.subr.bf16.mxu0 0
        %967 = vmatpush1.bf16.msra.mxu0 0
        %968 = vmatprep.subr.bf16.mxu0 0
        %969 = vmatpush1.bf16.msra.mxu0 0
        %970 = vmatprep.subr.bf16.mxu0 0
        %971 = vmatpush1.bf16.msra.mxu0 0
        %972 = vmatprep.subr.bf16.mxu0 0
        %973 = vmatpush1.bf16.msra.mxu0 0
        %974 = vmatprep.subr.bf16.mxu0 0
        %975 = vmatpush1.bf16.msra.mxu0 0
        %976 = vmatprep.subr.bf16.mxu0 0
        %977 = vmatpush1.bf16.msra.mxu0 0
        %978 = vmatprep.mubr.bf16.mxu0 0
        %979 = vmatmul.mubr.bf16.gmra.mrb[0].mxu0 %v880
        %v980 = vpop.f32.mrb[0].mxu0
        %v981 = vadd.f32 %v897, %v980
        %v982 = vpop.f32.mrb[0].mxu0
        %v983 = vpop.f32.mrb[0].mxu0
        %v984 = vpop.f32.mrb[0].mxu0
        %985 = vdwg.mxu0
        %v986 = vmax.f32 %v981, 0.0
        %v987 = vpack.c.bf16 %v986, %v986
        %v988 = vld [vmem:[#allocation5 + $0x148] sm:$0xf]
        %v989 = vld [vmem:[#allocation5 + $0x14c] sm:$0xf]
        %v990 = vld [vmem:[#allocation5 + $0x150] sm:$0xf]
        %v991 = vld [vmem:[#allocation5 + $0x154] sm:$0xf]
        %v992 = vld [vmem:[#allocation5 + $0x158] sm:$0xf]
        %v993 = vld [vmem:[#allocation5 + $0x15c] sm:$0xf]
        %v994 = vld [vmem:[#allocation5 + $0x160] sm:$0xf]
        %v995 = vld [vmem:[#allocation5 + $0x164] sm:$0xf]
        %v996 = vld [vmem:[#allocation5 + $0x168] sm:$0xf]
        %v997 = vld [vmem:[#allocation5 + $0x16c] sm:$0xf]
        %v998 = vld [vmem:[#allocation5 + $0x170] sm:$0xf]
        %v999 = vld [vmem:[#allocation5 + $0x174] sm:$0xf]
        %v1000 = vld [vmem:[#allocation5 + $0x178] sm:$0xf]
        %v1001 = vld [vmem:[#allocation5 + $0x17c] sm:$0xf]
        %v1002 = vld [vmem:[#allocation5 + $0x180] sm:$0xf]
        %v1003 = vld [vmem:[#allocation5 + $0x184] sm:$0xf]
        %v1004 = vld [vmem:[#allocation7 + $0xb] sm:$0x1]
        %v1021 = vunpack.c.l.b16 %v988
        %v1022 = vunpack.c.l.b16 %v989
        %v1023 = vunpack.c.l.b16 %v990
        %v1024 = vunpack.c.l.b16 %v991
        %v1025 = vunpack.c.l.b16 %v992
        %v1026 = vunpack.c.l.b16 %v993
        %v1027 = vunpack.c.l.b16 %v994
        %v1028 = vunpack.c.l.b16 %v995
        %v1029 = vunpack.c.l.b16 %v996
        %v1030 = vunpack.c.l.b16 %v997
        %v1031 = vunpack.c.l.b16 %v998
        %v1032 = vunpack.c.l.b16 %v999
        %v1033 = vunpack.c.l.b16 %v1000
        %v1034 = vunpack.c.l.b16 %v1001
        %v1035 = vunpack.c.l.b16 %v1002
        %v1036 = vunpack.c.l.b16 %v1003
        %v1037 = vpack.c.b16 %v1022, %v1021
        %v1038 = vpack.c.b16 %v1024, %v1023
        %v1039 = vpack.c.b16 %v1026, %v1025
        %v1040 = vpack.c.b16 %v1028, %v1027
        %v1041 = vpack.c.b16 %v1030, %v1029
        %v1042 = vpack.c.b16 %v1032, %v1031
        %v1043 = vpack.c.b16 %v1034, %v1033
        %v1044 = vpack.c.b16 %v1036, %v1035
        %1053 = vmatprep.subr.bf16.mxu0 0
        %1054 = vmatpush1.bf16.msra.mxu0 %v1037
        %1055 = vmatprep.subr.bf16.mxu0 0
        %1056 = vmatpush1.bf16.msra.mxu0 %v1038
        %1057 = vmatprep.subr.bf16.mxu0 0
        %1058 = vmatpush1.bf16.msra.mxu0 %v1039
        %1059 = vmatprep.subr.bf16.mxu0 0
        %1060 = vmatpush1.bf16.msra.mxu0 %v1040
        %1061 = vmatprep.subr.bf16.mxu0 0
        %1062 = vmatpush1.bf16.msra.mxu0 %v1041
        %1063 = vmatprep.subr.bf16.mxu0 0
        %1064 = vmatpush1.bf16.msra.mxu0 %v1042
        %1065 = vmatprep.subr.bf16.mxu0 0
        %1066 = vmatpush1.bf16.msra.mxu0 %v1043
        %1067 = vmatprep.subr.bf16.mxu0 0
        %1068 = vmatpush1.bf16.msra.mxu0 %v1044
        %1069 = vmatprep.subr.bf16.mxu0 0
        %1070 = vmatpush1.bf16.msra.mxu0 0
        %1071 = vmatprep.subr.bf16.mxu0 0
        %1072 = vmatpush1.bf16.msra.mxu0 0
        %1073 = vmatprep.subr.bf16.mxu0 0
        %1074 = vmatpush1.bf16.msra.mxu0 0
        %1075 = vmatprep.subr.bf16.mxu0 0
        %1076 = vmatpush1.bf16.msra.mxu0 0
        %1077 = vmatprep.subr.bf16.mxu0 0
        %1078 = vmatpush1.bf16.msra.mxu0 0
        %1079 = vmatprep.subr.bf16.mxu0 0
        %1080 = vmatpush1.bf16.msra.mxu0 0
        %1081 = vmatprep.subr.bf16.mxu0 0
        %1082 = vmatpush1.bf16.msra.mxu0 0
        %1083 = vmatprep.subr.bf16.mxu0 0
        %1084 = vmatpush1.bf16.msra.mxu0 0
        %1085 = vmatprep.mubr.bf16.mxu0 0
        %1086 = vmatmul.mubr.bf16.gmra.mrb[0].mxu0 %v987
        %v1087 = vpop.f32.mrb[0].mxu0
        %v1088 = vadd.f32 %v1004, %v1087
        %v1089 = vpop.f32.mrb[0].mxu0
        %v1090 = vpop.f32.mrb[0].mxu0
        %v1091 = vpop.f32.mrb[0].mxu0
        %1092 = vdwg.mxu0
        %v1093 = vxor.u32 %v1088, 2147483648
        %v1094 = vmul.f32 %v1093, 1.442695
        %v1095 = vpow.pop %v1094
        %v1096 = vadd.f32 %v1095, 1.0
        %v1097 = vrcp.pop %v1096
        %v1098 = vmul.f32 1.0, %v1097
        %1099 = vst [vmem:[%s213] sm:$0x1] %v1098
        %s1100 = sand.u32 %s97, 1
        %s1101 = scalar_lea.sflag [#allocation4], %s1100
        %s1102 = sand.u32 %s97, 1
        %s1103 = scalar_lea.vmem [#allocation8], %s1102
        // Predicated region
        $region45: #{tpu_custom_call.1} parent=31 // pred_check
          %p1104 = pneg %p107
        $region46: #{tpu_custom_call.1} parent=31 // pred_check_branch
          %1106 = sbr.rel (%p1104) target = $region48
        $region47: #{tpu_custom_call.1} parent=31 // pred_region
          %s1108 = ssub.s32 16, 16
          %1109 = vsyncadd %s1101, %s1108
          %s1110 = smul.addr %s21, 16
          %s1111 = scalar_lea.hbm %s3, %s1110
          %s1113 = sshll.u32 %s1103, 4
          %s1114 = int_to_ptr.vmem [resolvable:$true] %s1113
          %1116 = dma.vmem_to_hbm [thread:$0]  %s1114, 16, %s1111, %s1101
        $region48: #{tpu_custom_call.1} parent=31 // pred_fallthru
          _
      $region32: #{tpu_custom_call.1} parent=5 // pred_fallthru
        _
      %p1117 = scmp.le.s32.totalorder 2, %s16
      // Predicated region
      $region49: #{tpu_custom_call.1} parent=5 // pred_check
        %p1118 = pneg %p1117
      $region50: #{tpu_custom_call.1} parent=5 // pred_check_branch
        %1120 = sbr.rel (%p1118) target = $region52
      $region51: #{tpu_custom_call.1} parent=5 // pred_region
        %s1121 = ssub.s32 %s16, 2
        // Predicated region
        $region53: #{tpu_custom_call.1} parent=51 // pred_check
          %p1122 = pneg %p113
        $region54: #{tpu_custom_call.1} parent=51 // pred_check_branch
          %1124 = sbr.rel (%p1122) target = $region56
        $region55: #{tpu_custom_call.1} parent=51 // pred_region
          %s1125 = sand.u32 %s98, 1
          %s1126 = scalar_lea.sflag [#allocation4], %s1125
          %s1127 = sand.u32 %s98, 1
          %s1128 = scalar_lea.vmem [#allocation8], %s1127
          %1129 = dma.done %s1126, 16
        $region56: #{tpu_custom_call.1} parent=51 // pred_fallthru
          _
      $region52: #{tpu_custom_call.1} parent=5 // pred_fallthru
        _
    $region6: #{tpu_custom_call.1} parent=1 // loop_footer
      %s20 = sadd.s32 1, %s16
    $region7: #{tpu_custom_call.1} parent=1 // loop_footer_branch
      %15 = sbr.rel target = $region3
    $region8: #{tpu_custom_call.1} parent=1 // loop_exit
      _
    %1130 = vsyncpa [#allocation3], 1
    %s1131 = scalar_lea.sflag [#allocation3], 1
    %1132 = vsyncpa %s1131, 1
    %1133 = vsyncpa [#allocation6], 1
    %1134 = vsyncpa [#allocation4], 1
    %s1135 = scalar_lea.sflag [#allocation4], 1
    %1136 = vsyncpa %s1135, 1

</llo_original>
